<compile_context>
chip_gen: v7x
topology: tpu7x:2x2x1
jax: 0.10.0
libtpu: 0.0.40
codegen_flags: <defaults>
</compile_context>

<pallas_src>
import functools

import numpy as np
import jax
import jax.numpy as jnp
from jax import lax
from jax.experimental import pallas as pl
from jax.experimental.pallas import tpu as pltpu

HIGHEST = jax.lax.Precision.HIGHEST


# ----------------------------------------------------------------------------
# Pallas kernel: one grid step = E entities x TB mentions.
# ----------------------------------------------------------------------------
def _matcher_kernel(q_ref, qinv_ref, knf_ref, v_ref, ecf_ref, prm_ref, out_ref, *,
                    ot_eps, ot_iters):
    """Layouts (hidden axis H on lanes throughout the post-OT chain):

      q_ref    : (E, Sa, H)   f32   projected entity tokens (residual path)
      qinv_ref : (E, Sa, 1)   f32   1/||q|| per entity token (hoisted norm reduce)
      knf_ref  : (TB*Sb, H)   bf16  cosine-normalized mention keys, flattened
      v_ref    : (TB, Sb, H)  bf16  projected mention values
      ecf_ref  : (E, H)       f32   fc_cls(entity_cls)
      prm_ref  : (8, H)       f32   rows 0..4 = ln1_g, ln1_b, softpool_w, ln2_g, ln2_b
      out_ref  : (E, TB)      f32   g2l matching scores for this (entity, mention) tile
    """
    E, Sa, H = q_ref.shape
    TB, Sb, _ = v_ref.shape

    q = q_ref[...]                                            # [E, Sa, H] f32
    qn = (q * qinv_ref[...]).astype(jnp.bfloat16)             # unit rows, bf16 operand
    qn_flat = qn.reshape(E * Sa, H)                           # leading-dim merge (free)

    # ---- pairwise cosine similarity: one MXU matmul for the whole tile ------
    # c2[b*Sb + j, e*Sa + i] = <kn[b, j], qn[e, i]>; bf16 operands, f32 accumulation.
    c2 = lax.dot_general(knf_ref[...], qn_flat,
                         dimension_numbers=(((1,), (1,)), ((), ())),
                         preferred_element_type=jnp.float32)  # [TB*Sb, E*Sa]
    c3 = c2.reshape(TB, Sb, E * Sa)                           # sublane split only (cheap)

    # Split the entity axis out of the lane dimension with static per-entity slices
    # (a direct lane-splitting reshape is a relayout; slices become whole-vreg moves
    # once Sa is padded to a 128-multiple in production).
    K4 = jnp.stack(
        [jnp.exp(c3[:, :, e * Sa:(e + 1) * Sa] * (1.0 / ot_eps)) for e in range(E)],
        axis=0)                                               # [E, TB, Sb, Sa] = [e,b,j,i]

    # ---- Sinkhorn-Knopp with uniform marginals; exact division in the loop ----
    # TODO(synk): switch to log-domain Sinkhorn if ot_eps is ever configured < ~1/88.
    mu = 1.0 / Sa
    nu = 1.0 / Sb

    def sink_body(_, carry):
        u, vv = carry
        ru = jnp.sum(K4 * vv[:, :, :, None], axis=2)          # [E, TB, Sa]  sum over j
        u = mu / jnp.maximum(ru, 1e-9)
        rv = jnp.sum(K4 * u[:, :, None, :], axis=3)           # [E, TB, Sb]  sum over i
        vv = nu / jnp.maximum(rv, 1e-9)
        return u, vv

    u0 = jnp.ones((E, TB, Sa), jnp.float32)
    v0 = jnp.ones((E, TB, Sb), jnp.float32)
    u, vv = lax.fori_loop(0, ot_iters, sink_body, (u0, v0), unroll=True)
    T4 = K4 * u[:, :, None, :] * vv[:, :, :, None]            # transport plan [e,b,j,i]

    # F.normalize(plan, dim=-1): dim=-1 is the mention-token axis j == axis 2 here.
    P4 = T4 * lax.rsqrt(jnp.maximum(jnp.sum(T4 * T4, axis=2, keepdims=True), 1e-24))
    P4 = P4.astype(jnp.bfloat16)

    # ---- attended values + residual (H stays on lanes) ------------------------
    # att[e, b, i, h] = sum_j P[e, b, j, i] * v[b, j, h]; one 3-D batched einsum per
    # entity of the block (K = Sb is small, so the per-entity M = Sa costs nothing).
    v_blk = v_ref[...]
    att4 = jnp.stack(
        [jnp.einsum('bji,bjh->bih', P4[e], v_blk,
                    preferred_element_type=jnp.float32) + q[e]
         for e in range(E)],
        axis=0)                                               # [E, TB, Sa, H] f32

    prm = prm_ref[...]
    g1, b1, spw, g2, b2 = prm[0], prm[1], prm[2], prm[3], prm[4]

    # LayerNorm over hidden (lane-direction reduce).
    m1 = jnp.mean(att4, axis=-1, keepdims=True)
    var1 = jnp.mean(jnp.square(att4 - m1), axis=-1, keepdims=True)
    x = (att4 - m1) * lax.rsqrt(var1 + 1e-5) * g1 + b1        # [E, TB, Sa, H]

    # SoftPool over the entity-token axis i (fc bias folded out: exact no-op).
    logits = jnp.sum(x * spw, axis=-1)                        # [E, TB, Sa]
    ex = jnp.exp(logits - jnp.max(logits, axis=-1, keepdims=True))
    w = ex * pl.reciprocal(jnp.sum(ex, axis=-1, keepdims=True), approx=True)
    pooled = jnp.sum(x * w[..., None], axis=2)                # [E, TB, H]

    m2 = jnp.mean(pooled, axis=-1, keepdims=True)
    var2 = jnp.mean(jnp.square(pooled - m2), axis=-1, keepdims=True)
    ctx = (pooled - m2) * lax.rsqrt(var2 + 1e-5) * g2 + b2    # [E, TB, H]

    # g2l[e, b] = <ecf[e], ctx[e, b]>  ->  one dense (E, TB) tile store.
    out_ref[...] = jnp.sum(ctx * ecf_ref[...][:, None, :], axis=-1)


# ----------------------------------------------------------------------------
# Wrapper: projections + entity/mention-invariant prep in XLA, hot path in Pallas.
# ----------------------------------------------------------------------------
def _pick_block(total, per_item, lane_target, max_block=None):
    """Largest divisor d of `total` with d*per_item <= max(lane_target, per_item)."""
    cap = max(lane_target, per_item)
    best = 1
    for d in range(1, total + 1):
        if total % d:
            continue
        if max_block is not None and d > max_block:
            continue
        if d * per_item <= cap:
            best = d
    return best


def uni_model_matcher(entity_cls, entity_tokens, mention_cls, mention_tokens,
                      params, *, ot_eps, ot_iters):
    f32 = jnp.float32
    q = entity_tokens @ params['Wq'] + params['bq']          # [A, Sa, H]
    k = mention_tokens @ params['Wk'] + params['bk']         # [B, Sb, H]
    v = mention_tokens @ params['Wv'] + params['bv']         # [B, Sb, H]
    ecf = entity_cls @ params['Wcls'] + params['bcls']       # [A, H]

    A, Sa, H = q.shape
    B, Sb, _ = k.shape

    # Hoisted out of the kernel: key cosine normalization (once, not per entity block),
    # the q-norm reduce (passed as 1/||q||), and the g2g score (one XLA matmul).
    qinv = lax.rsqrt(jnp.maximum(jnp.sum(q * q, axis=-1, keepdims=True), 1e-16))
    kn = k * lax.rsqrt(jnp.maximum(jnp.sum(k * k, axis=-1, keepdims=True), 1e-16))
    knf = kn.reshape(B * Sb, H).astype(jnp.bfloat16)         # bf16 MXU operand / VMEM
    vb = v.astype(jnp.bfloat16)
    g2g = mention_cls @ entity_cls.T                         # [B, A]

    # Pack the five (1, H) parameters into one 8-row slab (single constant block).
    prm = jnp.zeros((8, H), f32)
    prm = prm.at[0].set(params['ln1g'].reshape(-1))
    prm = prm.at[1].set(params['ln1b'].reshape(-1))
    prm = prm.at[2].set(params['spw'].reshape(-1))
    prm = prm.at[3].set(params['ln2g'].reshape(-1))
    prm = prm.at[4].set(params['ln2b'].reshape(-1))

    # Block sizes: E entities and TB mentions per step.  E*Sa / TB*Sb target ~256
    # (a 256-multiple is also a 128-multiple, so it suits both MXU generations once
    # production shapes are padded); E capped to bound the per-entity unroll.
    E = _pick_block(A, Sa, 256, max_block=16)
    TB = _pick_block(B, Sb, 512)

    # Per-generation VMEM budget: ~3/4 of physical (≈48 MiB on v7x, ≈96 MiB on v5e/v6e),
    # never less than the per-step working-set estimate.
    try:
        phys_vmem = int(pltpu.get_tpu_info().vmem_capacity_bytes)
    except Exception:
        phys_vmem = 64 << 20                                 # conservative fallback
    per_step_in = (E * Sa * H + E * Sa + E * H + 8 * H) * 4 + 2 * (TB * Sb * H) * 2
    interm = 6 * 4 * E * TB * Sb * Sa + 4 * 4 * E * TB * Sa * H
    need = 2 * per_step_in + interm + 2 * 4 * E * TB + (4 << 20)
    vmem_bytes = int(min(min(100 << 20, (phys_vmem * 3) // 4),
                         max(need, 32 << 20)))

    kernel = functools.partial(_matcher_kernel, ot_eps=ot_eps, ot_iters=ot_iters)

    g2l = pl.pallas_call(
        kernel,
        out_shape=jax.ShapeDtypeStruct((A, B), f32),
        grid_spec=pltpu.PrefetchScalarGridSpec(
            num_scalar_prefetch=0,
            grid=(A // E, B // TB),
            in_specs=[
                pl.BlockSpec((E, Sa, H), lambda a, b: (a, 0, 0)),      # q (residual)
                pl.BlockSpec((E, Sa, 1), lambda a, b: (a, 0, 0)),      # 1/||q||
                pl.BlockSpec((TB * Sb, H), lambda a, b: (b, 0)),       # kn, flattened
                pl.BlockSpec((TB, Sb, H), lambda a, b: (b, 0, 0)),     # v
                pl.BlockSpec((E, H), lambda a, b: (a, 0)),             # fc_cls(entity)
                pl.BlockSpec((8, H), lambda a, b: (0, 0)),             # packed params
            ],
            out_specs=pl.BlockSpec((E, TB), lambda a, b: (a, b)),
        ),
        compiler_params=pltpu.CompilerParams(
            dimension_semantics=("parallel", "parallel"),
            vmem_limit_bytes=vmem_bytes,
        ),
    )(q, qinv, knf, vb, ecf, prm)

    # Final fusion (cheap XLA): scores[b, a] = (g2l[a, b] + g2g[b, a]) / 2.
    return 0.5 * (g2l.T + g2g)                               # [B, A]


# ----------------------------------------------------------------------------
# Pure-JAX reference (mirrors the PyTorch forward) for validation.
# ----------------------------------------------------------------------------
def reference(entity_cls, entity_tokens, mention_cls, mention_tokens,
              p, *, ot_eps, ot_iters):
    q = entity_tokens @ p['Wq'] + p['bq']
    k = mention_tokens @ p['Wk'] + p['bk']
    v = mention_tokens @ p['Wv'] + p['bv']
    ecf = entity_cls @ p['Wcls'] + p['bcls']
    A, Sa, H = q.shape
    B, Sb, _ = k.shape

    qe = jnp.broadcast_to(q[:, None], (A, B, Sa, H))
    ke = jnp.broadcast_to(k[None], (A, B, Sb, H))
    qn = qe / jnp.maximum(jnp.linalg.norm(qe, axis=-1, keepdims=True), 1e-8)
    kn = ke / jnp.maximum(jnp.linalg.norm(ke, axis=-1, keepdims=True), 1e-8)
    C = jnp.einsum('abid,abjd->abij', qn, kn, precision=HIGHEST)

    Kmat = jnp.exp(C / ot_eps)
    mu, nu = 1.0 / Sa, 1.0 / Sb
    u = jnp.ones((A, B, Sa), jnp.float32)
    vv = jnp.ones((A, B, Sb), jnp.float32)
    for _ in range(ot_iters):
        u = mu / jnp.maximum(jnp.sum(Kmat * vv[..., None, :], axis=-1), 1e-9)
        vv = nu / jnp.maximum(jnp.sum(Kmat * u[..., :, None], axis=-2), 1e-9)
    T = u[..., :, None] * Kmat * vv[..., None, :]
    P = T / jnp.maximum(jnp.linalg.norm(T, axis=-1, keepdims=True), 1e-12)

    def ln(x, g, b):
        m = jnp.mean(x, -1, keepdims=True)
        var = jnp.mean(jnp.square(x - m), -1, keepdims=True)
        return (x - m) / jnp.sqrt(var + 1e-5) * g + b

    att = jnp.einsum('abij,bjd->abid', P, v, precision=HIGHEST) + qe
    x = ln(att, p['ln1g'].reshape(-1), p['ln1b'].reshape(-1))

    logits = jnp.sum(x * p['spw'].reshape(-1), -1, keepdims=True) + p['spb'].reshape(())
    w = jax.nn.softmax(logits, axis=-2)
    pooled = jnp.sum(x * w, axis=-2)
    ctx = ln(pooled, p['ln2g'].reshape(-1), p['ln2b'].reshape(-1))

    g2l = jnp.sum(ecf[:, None, :] * ctx, axis=-1)            # [A, B]
    g2g = mention_cls @ entity_cls.T                         # [B, A]
    return 0.5 * (g2l.T + g2g)


def init_params(key, d_in, hidden):
    ks = jax.random.split(key, 6)
    lin = lambda k, i, o: 0.05 * jax.random.normal(k, (i, o), jnp.float32)
    return dict(
        Wq=lin(ks[0], d_in, hidden), bq=0.01 * jax.random.normal(ks[1], (hidden,), jnp.float32),
        Wk=lin(ks[2], d_in, hidden), bk=jnp.zeros((hidden,), jnp.float32),
        Wv=lin(ks[3], d_in, hidden), bv=jnp.zeros((hidden,), jnp.float32),
        Wcls=lin(ks[4], d_in, hidden), bcls=jnp.zeros((hidden,), jnp.float32),
        ln1g=jnp.ones((1, hidden), jnp.float32), ln1b=jnp.zeros((1, hidden), jnp.float32),
        spw=0.05 * jax.random.normal(ks[5], (1, hidden), jnp.float32),
        spb=jnp.zeros((1, 1), jnp.float32),
        ln2g=jnp.ones((1, hidden), jnp.float32), ln2b=jnp.zeros((1, hidden), jnp.float32),
    )


if __name__ == "__main__":
    A, B, SA, SB, D_IN, H = 4, 2, 8, 8, 32, 32          # small, forward-consistent
    OT_EPS, OT_ITERS = 0.1, 3

    key = jax.random.PRNGKey(0)
    k1, k2, k3, k4, kp = jax.random.split(key, 5)
    entity_cls = jax.random.normal(k1, (A, D_IN), jnp.float32)
    entity_tokens = jax.random.normal(k2, (A, SA, D_IN), jnp.float32)
    mention_cls = jax.random.normal(k3, (B, D_IN), jnp.float32)
    mention_tokens = jax.random.normal(k4, (B, SB, D_IN), jnp.float32)
    params = init_params(kp, D_IN, H)

    out = uni_model_matcher(entity_cls, entity_tokens, mention_cls, mention_tokens,
                            params, ot_eps=OT_EPS, ot_iters=OT_ITERS)
    out = jax.block_until_ready(out)

    ref = reference(entity_cls, entity_tokens, mention_cls, mention_tokens,
                    params, ot_eps=OT_EPS, ot_iters=OT_ITERS)

    assert out.shape == (B, A), out.shape
    # bf16 MXU operands truncate the cosine logits before exp(C/eps); the resulting
    # <~1% plan perturbation justifies a slightly wider tolerance than the f32 path.
    np.testing.assert_allclose(np.asarray(out), np.asarray(ref), rtol=5e-2, atol=5e-2)
    print("KERNEL_OK")
</pallas_src>

<mosaic_0001>
module attributes {stable_mosaic.version = 11 : i64} {
  func.func @_matcher_kernel(%arg0: i32, %arg1: i32, %arg2: memref<4x8x32xf32, #tpu.memory_space<vmem>>, %arg3: memref<4x8x1xf32, #tpu.memory_space<vmem>>, %arg4: memref<16x32xbf16, #tpu.memory_space<vmem>>, %arg5: memref<2x8x32xbf16, #tpu.memory_space<vmem>>, %arg6: memref<4x32xf32, #tpu.memory_space<vmem>>, %arg7: memref<8x32xf32, #tpu.memory_space<vmem>>, %arg8: memref<4x2xf32, #tpu.memory_space<vmem>>) attributes {dimension_semantics = [#tpu.dimension_semantics<parallel>, #tpu.dimension_semantics<parallel>], iteration_bounds = array<i64: 1, 1>, scalar_prefetch = 0 : i64, scratch_operands = 0 : i64, tpu.core_type = #tpu.core_type<tc>, window_params = [{transform_indices = @transform_0, window_bounds = array<i64: 4, 8, 32>}, {transform_indices = @transform_1, window_bounds = array<i64: 4, 8, 1>}, {transform_indices = @transform_2, window_bounds = array<i64: 16, 32>}, {transform_indices = @transform_3, window_bounds = array<i64: 2, 8, 32>}, {transform_indices = @transform_4, window_bounds = array<i64: 4, 32>}, {pipeline_mode = #tpu.pipeline_mode<synchronous>, transform_indices = @transform_5, window_bounds = array<i64: 8, 32>}, {transform_indices = @transform_6, window_bounds = array<i64: 4, 2>}]} {
    %c0 = arith.constant 0 : index
    %c0_0 = arith.constant 0 : index
    %c0_1 = arith.constant 0 : index
    %0 = vector.load %arg2[%c0, %c0_0, %c0_1] : memref<4x8x32xf32, #tpu.memory_space<vmem>>, vector<4x8x32xf32>
    %c0_2 = arith.constant 0 : index
    %c0_3 = arith.constant 0 : index
    %c0_4 = arith.constant 0 : index
    %1 = vector.load %arg3[%c0_2, %c0_3, %c0_4] : memref<4x8x1xf32, #tpu.memory_space<vmem>>, vector<4x8x1xf32>
    %2 = vector.broadcast %1 : vector<4x8x1xf32> to vector<4x8x32xf32>
    %3 = arith.mulf %0, %2 : vector<4x8x32xf32>
    %4 = arith.truncf %3 : vector<4x8x32xf32> to vector<4x8x32xbf16>
    %5 = vector.shape_cast %4 : vector<4x8x32xbf16> to vector<32x32xbf16>
    %c0_5 = arith.constant 0 : index
    %c0_6 = arith.constant 0 : index
    %6 = vector.load %arg4[%c0_5, %c0_6] : memref<16x32xbf16, #tpu.memory_space<vmem>>, vector<16x32xbf16>
    %cst = arith.constant dense<0.000000e+00> : vector<16x32xf32>
    %7 = tpu.matmul %6, %5, %cst {dimension_numbers = #tpu.dot_dimension_numbers<[1], [1], [0], [0], [0, 0, 1, 0], [], []>} : vector<16x32xbf16>, vector<32x32xbf16>, vector<16x32xf32> -> vector<16x32xf32>
    %8 = vector.shape_cast %7 : vector<16x32xf32> to vector<2x8x32xf32>
    %9 = vector.extract_strided_slice %8 {offsets = [0, 0, 0], sizes = [2, 8, 8], strides = [1, 1, 1]} : vector<2x8x32xf32> to vector<2x8x8xf32>
    %cst_7 = arith.constant 1.000000e+01 : f32
    %10 = vector.broadcast %cst_7 : f32 to vector<2x8x8xf32>
    %11 = arith.mulf %9, %10 : vector<2x8x8xf32>
    %12 = math.exp %11 : vector<2x8x8xf32>
    %13 = vector.extract_strided_slice %8 {offsets = [0, 0, 8], sizes = [2, 8, 8], strides = [1, 1, 1]} : vector<2x8x32xf32> to vector<2x8x8xf32>
    %cst_8 = arith.constant 1.000000e+01 : f32
    %14 = vector.broadcast %cst_8 : f32 to vector<2x8x8xf32>
    %15 = arith.mulf %13, %14 : vector<2x8x8xf32>
    %16 = math.exp %15 : vector<2x8x8xf32>
    %17 = vector.extract_strided_slice %8 {offsets = [0, 0, 16], sizes = [2, 8, 8], strides = [1, 1, 1]} : vector<2x8x32xf32> to vector<2x8x8xf32>
    %cst_9 = arith.constant 1.000000e+01 : f32
    %18 = vector.broadcast %cst_9 : f32 to vector<2x8x8xf32>
    %19 = arith.mulf %17, %18 : vector<2x8x8xf32>
    %20 = math.exp %19 : vector<2x8x8xf32>
    %21 = vector.extract_strided_slice %8 {offsets = [0, 0, 24], sizes = [2, 8, 8], strides = [1, 1, 1]} : vector<2x8x32xf32> to vector<2x8x8xf32>
    %cst_10 = arith.constant 1.000000e+01 : f32
    %22 = vector.broadcast %cst_10 : f32 to vector<2x8x8xf32>
    %23 = arith.mulf %21, %22 : vector<2x8x8xf32>
    %24 = math.exp %23 : vector<2x8x8xf32>
    %25 = vector.shape_cast %12 : vector<2x8x8xf32> to vector<1x2x8x8xf32>
    %26 = vector.shape_cast %16 : vector<2x8x8xf32> to vector<1x2x8x8xf32>
    %27 = vector.shape_cast %20 : vector<2x8x8xf32> to vector<1x2x8x8xf32>
    %28 = vector.shape_cast %24 : vector<2x8x8xf32> to vector<1x2x8x8xf32>
    %29 = tpu.concatenate %25, %26, %27, %28 in 0 : vector<1x2x8x8xf32>, vector<1x2x8x8xf32>, vector<1x2x8x8xf32>, vector<1x2x8x8xf32> -> vector<4x2x8x8xf32>
    %cst_11 = arith.constant 1.000000e+00 : f32
    %30 = vector.broadcast %cst_11 : f32 to vector<4x2x8xf32>
    %cst_12 = arith.constant 1.000000e+00 : f32
    %31 = vector.broadcast %cst_12 : f32 to vector<4x2x8xf32>
    %c0_i32 = arith.constant 0 : i32
    %32 = vector.shape_cast %31 : vector<4x2x8xf32> to vector<4x2x8x1xf32>
    %33 = vector.broadcast %32 : vector<4x2x8x1xf32> to vector<4x2x8x8xf32>
    %34 = arith.mulf %29, %33 : vector<4x2x8x8xf32>
    %cst_13 = arith.constant dense<0.000000e+00> : vector<4x2x8xf32>
    %35 = vector.multi_reduction <add>, %34, %cst_13 [2] : vector<4x2x8x8xf32> to vector<4x2x8xf32>
    %cst_14 = arith.constant 9.99999971E-10 : f32
    %36 = vector.broadcast %cst_14 : f32 to vector<4x2x8xf32>
    %37 = arith.maximumf %35, %36 : vector<4x2x8xf32>
    %cst_15 = arith.constant 1.250000e-01 : f32
    %38 = vector.broadcast %cst_15 : f32 to vector<4x2x8xf32>
    %39 = arith.divf %38, %37 : vector<4x2x8xf32>
    %40 = vector.shape_cast %39 : vector<4x2x8xf32> to vector<4x2x1x8xf32>
    %41 = vector.broadcast %40 : vector<4x2x1x8xf32> to vector<4x2x8x8xf32>
    %42 = arith.mulf %29, %41 : vector<4x2x8x8xf32>
    %cst_16 = arith.constant dense<0.000000e+00> : vector<4x2x8xf32>
    %43 = vector.multi_reduction <add>, %42, %cst_16 [3] : vector<4x2x8x8xf32> to vector<4x2x8xf32>
    %cst_17 = arith.constant 9.99999971E-10 : f32
    %44 = vector.broadcast %cst_17 : f32 to vector<4x2x8xf32>
    %45 = arith.maximumf %43, %44 : vector<4x2x8xf32>
    %cst_18 = arith.constant 1.250000e-01 : f32
    %46 = vector.broadcast %cst_18 : f32 to vector<4x2x8xf32>
    %47 = arith.divf %46, %45 : vector<4x2x8xf32>
    %c1_i32 = arith.constant 1 : i32
    %48 = vector.shape_cast %47 : vector<4x2x8xf32> to vector<4x2x8x1xf32>
    %49 = vector.broadcast %48 : vector<4x2x8x1xf32> to vector<4x2x8x8xf32>
    %50 = arith.mulf %29, %49 : vector<4x2x8x8xf32>
    %cst_19 = arith.constant dense<0.000000e+00> : vector<4x2x8xf32>
    %51 = vector.multi_reduction <add>, %50, %cst_19 [2] : vector<4x2x8x8xf32> to vector<4x2x8xf32>
    %cst_20 = arith.constant 9.99999971E-10 : f32
    %52 = vector.broadcast %cst_20 : f32 to vector<4x2x8xf32>
    %53 = arith.maximumf %51, %52 : vector<4x2x8xf32>
    %cst_21 = arith.constant 1.250000e-01 : f32
    %54 = vector.broadcast %cst_21 : f32 to vector<4x2x8xf32>
    %55 = arith.divf %54, %53 : vector<4x2x8xf32>
    %56 = vector.shape_cast %55 : vector<4x2x8xf32> to vector<4x2x1x8xf32>
    %57 = vector.broadcast %56 : vector<4x2x1x8xf32> to vector<4x2x8x8xf32>
    %58 = arith.mulf %29, %57 : vector<4x2x8x8xf32>
    %cst_22 = arith.constant dense<0.000000e+00> : vector<4x2x8xf32>
    %59 = vector.multi_reduction <add>, %58, %cst_22 [3] : vector<4x2x8x8xf32> to vector<4x2x8xf32>
    %cst_23 = arith.constant 9.99999971E-10 : f32
    %60 = vector.broadcast %cst_23 : f32 to vector<4x2x8xf32>
    %61 = arith.maximumf %59, %60 : vector<4x2x8xf32>
    %cst_24 = arith.constant 1.250000e-01 : f32
    %62 = vector.broadcast %cst_24 : f32 to vector<4x2x8xf32>
    %63 = arith.divf %62, %61 : vector<4x2x8xf32>
    %c2_i32 = arith.constant 2 : i32
    %64 = vector.shape_cast %63 : vector<4x2x8xf32> to vector<4x2x8x1xf32>
    %65 = vector.broadcast %64 : vector<4x2x8x1xf32> to vector<4x2x8x8xf32>
    %66 = arith.mulf %29, %65 : vector<4x2x8x8xf32>
    %cst_25 = arith.constant dense<0.000000e+00> : vector<4x2x8xf32>
    %67 = vector.multi_reduction <add>, %66, %cst_25 [2] : vector<4x2x8x8xf32> to vector<4x2x8xf32>
    %cst_26 = arith.constant 9.99999971E-10 : f32
    %68 = vector.broadcast %cst_26 : f32 to vector<4x2x8xf32>
    %69 = arith.maximumf %67, %68 : vector<4x2x8xf32>
    %cst_27 = arith.constant 1.250000e-01 : f32
    %70 = vector.broadcast %cst_27 : f32 to vector<4x2x8xf32>
    %71 = arith.divf %70, %69 : vector<4x2x8xf32>
    %72 = vector.shape_cast %71 : vector<4x2x8xf32> to vector<4x2x1x8xf32>
    %73 = vector.broadcast %72 : vector<4x2x1x8xf32> to vector<4x2x8x8xf32>
    %74 = arith.mulf %29, %73 : vector<4x2x8x8xf32>
    %cst_28 = arith.constant dense<0.000000e+00> : vector<4x2x8xf32>
    %75 = vector.multi_reduction <add>, %74, %cst_28 [3] : vector<4x2x8x8xf32> to vector<4x2x8xf32>
    %cst_29 = arith.constant 9.99999971E-10 : f32
    %76 = vector.broadcast %cst_29 : f32 to vector<4x2x8xf32>
    %77 = arith.maximumf %75, %76 : vector<4x2x8xf32>
    %cst_30 = arith.constant 1.250000e-01 : f32
    %78 = vector.broadcast %cst_30 : f32 to vector<4x2x8xf32>
    %79 = arith.divf %78, %77 : vector<4x2x8xf32>
    %80 = vector.shape_cast %71 : vector<4x2x8xf32> to vector<4x2x1x8xf32>
    %81 = vector.broadcast %80 : vector<4x2x1x8xf32> to vector<4x2x8x8xf32>
    %82 = arith.mulf %29, %81 : vector<4x2x8x8xf32>
    %83 = vector.shape_cast %79 : vector<4x2x8xf32> to vector<4x2x8x1xf32>
    %84 = vector.broadcast %83 : vector<4x2x8x1xf32> to vector<4x2x8x8xf32>
    %85 = arith.mulf %82, %84 : vector<4x2x8x8xf32>
    %86 = arith.mulf %85, %85 : vector<4x2x8x8xf32>
    %cst_31 = arith.constant dense<0.000000e+00> : vector<4x2x8xf32>
    %87 = vector.multi_reduction <add>, %86, %cst_31 [2] : vector<4x2x8x8xf32> to vector<4x2x8xf32>
    %88 = vector.shape_cast %87 : vector<4x2x8xf32> to vector<4x2x1x8xf32>
    %cst_32 = arith.constant 1.000000e-24 : f32
    %89 = vector.broadcast %cst_32 : f32 to vector<4x2x1x8xf32>
    %90 = arith.maximumf %88, %89 : vector<4x2x1x8xf32>
    %91 = math.rsqrt %90 : vector<4x2x1x8xf32>
    %92 = vector.broadcast %91 : vector<4x2x1x8xf32> to vector<4x2x8x8xf32>
    %93 = arith.mulf %85, %92 : vector<4x2x8x8xf32>
    %94 = arith.truncf %93 : vector<4x2x8x8xf32> to vector<4x2x8x8xbf16>
    %c0_33 = arith.constant 0 : index
    %c0_34 = arith.constant 0 : index
    %c0_35 = arith.constant 0 : index
    %95 = vector.load %arg5[%c0_33, %c0_34, %c0_35] : memref<2x8x32xbf16, #tpu.memory_space<vmem>>, vector<2x8x32xbf16>
    %96 = vector.extract_strided_slice %94 {offsets = [0, 0, 0, 0], sizes = [1, 2, 8, 8], strides = [1, 1, 1, 1]} : vector<4x2x8x8xbf16> to vector<1x2x8x8xbf16>
    %97 = vector.shape_cast %96 : vector<1x2x8x8xbf16> to vector<2x8x8xbf16>
    "tpu.trace_start"() <{level = 10 : i32, message = "bji,bjh->bih"}> : () -> ()
    %cst_36 = arith.constant dense<0.000000e+00> : vector<2x8x32xf32>
    %98 = tpu.matmul %97, %95, %cst_36 {dimension_numbers = #tpu.dot_dimension_numbers<[1], [1], [2], [2], [0, 0, 0, 2, 1, 2], [0], [0]>} : vector<2x8x8xbf16>, vector<2x8x32xbf16>, vector<2x8x32xf32> -> vector<2x8x32xf32>
    "tpu.trace_stop"() : () -> ()
    %99 = vector.extract_strided_slice %0 {offsets = [0, 0, 0], sizes = [1, 8, 32], strides = [1, 1, 1]} : vector<4x8x32xf32> to vector<1x8x32xf32>
    %100 = vector.shape_cast %99 : vector<1x8x32xf32> to vector<8x32xf32>
    %101 = vector.shape_cast %100 : vector<8x32xf32> to vector<1x8x32xf32>
    %102 = vector.broadcast %101 : vector<1x8x32xf32> to vector<2x8x32xf32>
    %103 = arith.addf %98, %102 : vector<2x8x32xf32>
    %104 = vector.extract_strided_slice %94 {offsets = [1, 0, 0, 0], sizes = [1, 2, 8, 8], strides = [1, 1, 1, 1]} : vector<4x2x8x8xbf16> to vector<1x2x8x8xbf16>
    %105 = vector.shape_cast %104 : vector<1x2x8x8xbf16> to vector<2x8x8xbf16>
    "tpu.trace_start"() <{level = 10 : i32, message = "bji,bjh->bih"}> : () -> ()
    %cst_37 = arith.constant dense<0.000000e+00> : vector<2x8x32xf32>
    %106 = tpu.matmul %105, %95, %cst_37 {dimension_numbers = #tpu.dot_dimension_numbers<[1], [1], [2], [2], [0, 0, 0, 2, 1, 2], [0], [0]>} : vector<2x8x8xbf16>, vector<2x8x32xbf16>, vector<2x8x32xf32> -> vector<2x8x32xf32>
    "tpu.trace_stop"() : () -> ()
    %107 = vector.extract_strided_slice %0 {offsets = [1, 0, 0], sizes = [1, 8, 32], strides = [1, 1, 1]} : vector<4x8x32xf32> to vector<1x8x32xf32>
    %108 = vector.shape_cast %107 : vector<1x8x32xf32> to vector<8x32xf32>
    %109 = vector.shape_cast %108 : vector<8x32xf32> to vector<1x8x32xf32>
    %110 = vector.broadcast %109 : vector<1x8x32xf32> to vector<2x8x32xf32>
    %111 = arith.addf %106, %110 : vector<2x8x32xf32>
    %112 = vector.extract_strided_slice %94 {offsets = [2, 0, 0, 0], sizes = [1, 2, 8, 8], strides = [1, 1, 1, 1]} : vector<4x2x8x8xbf16> to vector<1x2x8x8xbf16>
    %113 = vector.shape_cast %112 : vector<1x2x8x8xbf16> to vector<2x8x8xbf16>
    "tpu.trace_start"() <{level = 10 : i32, message = "bji,bjh->bih"}> : () -> ()
    %cst_38 = arith.constant dense<0.000000e+00> : vector<2x8x32xf32>
    %114 = tpu.matmul %113, %95, %cst_38 {dimension_numbers = #tpu.dot_dimension_numbers<[1], [1], [2], [2], [0, 0, 0, 2, 1, 2], [0], [0]>} : vector<2x8x8xbf16>, vector<2x8x32xbf16>, vector<2x8x32xf32> -> vector<2x8x32xf32>
    "tpu.trace_stop"() : () -> ()
    %115 = vector.extract_strided_slice %0 {offsets = [2, 0, 0], sizes = [1, 8, 32], strides = [1, 1, 1]} : vector<4x8x32xf32> to vector<1x8x32xf32>
    %116 = vector.shape_cast %115 : vector<1x8x32xf32> to vector<8x32xf32>
    %117 = vector.shape_cast %116 : vector<8x32xf32> to vector<1x8x32xf32>
    %118 = vector.broadcast %117 : vector<1x8x32xf32> to vector<2x8x32xf32>
    %119 = arith.addf %114, %118 : vector<2x8x32xf32>
    %120 = vector.extract_strided_slice %94 {offsets = [3, 0, 0, 0], sizes = [1, 2, 8, 8], strides = [1, 1, 1, 1]} : vector<4x2x8x8xbf16> to vector<1x2x8x8xbf16>
    %121 = vector.shape_cast %120 : vector<1x2x8x8xbf16> to vector<2x8x8xbf16>
    "tpu.trace_start"() <{level = 10 : i32, message = "bji,bjh->bih"}> : () -> ()
    %cst_39 = arith.constant dense<0.000000e+00> : vector<2x8x32xf32>
    %122 = tpu.matmul %121, %95, %cst_39 {dimension_numbers = #tpu.dot_dimension_numbers<[1], [1], [2], [2], [0, 0, 0, 2, 1, 2], [0], [0]>} : vector<2x8x8xbf16>, vector<2x8x32xbf16>, vector<2x8x32xf32> -> vector<2x8x32xf32>
    "tpu.trace_stop"() : () -> ()
    %123 = vector.extract_strided_slice %0 {offsets = [3, 0, 0], sizes = [1, 8, 32], strides = [1, 1, 1]} : vector<4x8x32xf32> to vector<1x8x32xf32>
    %124 = vector.shape_cast %123 : vector<1x8x32xf32> to vector<8x32xf32>
    %125 = vector.shape_cast %124 : vector<8x32xf32> to vector<1x8x32xf32>
    %126 = vector.broadcast %125 : vector<1x8x32xf32> to vector<2x8x32xf32>
    %127 = arith.addf %122, %126 : vector<2x8x32xf32>
    %128 = vector.shape_cast %103 : vector<2x8x32xf32> to vector<1x2x8x32xf32>
    %129 = vector.shape_cast %111 : vector<2x8x32xf32> to vector<1x2x8x32xf32>
    %130 = vector.shape_cast %119 : vector<2x8x32xf32> to vector<1x2x8x32xf32>
    %131 = vector.shape_cast %127 : vector<2x8x32xf32> to vector<1x2x8x32xf32>
    %132 = tpu.concatenate %128, %129, %130, %131 in 0 : vector<1x2x8x32xf32>, vector<1x2x8x32xf32>, vector<1x2x8x32xf32>, vector<1x2x8x32xf32> -> vector<4x2x8x32xf32>
    %c0_40 = arith.constant 0 : index
    %c0_41 = arith.constant 0 : index
    %133 = vector.load %arg7[%c0_40, %c0_41] : memref<8x32xf32, #tpu.memory_space<vmem>>, vector<8x32xf32>
    %134 = vector.extract_strided_slice %133 {offsets = [0, 0], sizes = [1, 32], strides = [1, 1]} : vector<8x32xf32> to vector<1x32xf32>
    %135 = vector.shape_cast %134 : vector<1x32xf32> to vector<32xf32>
    %136 = vector.extract_strided_slice %133 {offsets = [1, 0], sizes = [1, 32], strides = [1, 1]} : vector<8x32xf32> to vector<1x32xf32>
    %137 = vector.shape_cast %136 : vector<1x32xf32> to vector<32xf32>
    %138 = vector.extract_strided_slice %133 {offsets = [2, 0], sizes = [1, 32], strides = [1, 1]} : vector<8x32xf32> to vector<1x32xf32>
    %139 = vector.shape_cast %138 : vector<1x32xf32> to vector<32xf32>
    %140 = vector.extract_strided_slice %133 {offsets = [3, 0], sizes = [1, 32], strides = [1, 1]} : vector<8x32xf32> to vector<1x32xf32>
    %141 = vector.shape_cast %140 : vector<1x32xf32> to vector<32xf32>
    %142 = vector.extract_strided_slice %133 {offsets = [4, 0], sizes = [1, 32], strides = [1, 1]} : vector<8x32xf32> to vector<1x32xf32>
    %143 = vector.shape_cast %142 : vector<1x32xf32> to vector<32xf32>
    %cst_42 = arith.constant dense<0.000000e+00> : vector<4x2x8xf32>
    %144 = vector.multi_reduction <add>, %132, %cst_42 [3] : vector<4x2x8x32xf32> to vector<4x2x8xf32>
    %145 = vector.shape_cast %144 : vector<4x2x8xf32> to vector<4x2x8x1xf32>
    %cst_43 = arith.constant 3.200000e+01 : f32
    %146 = vector.broadcast %cst_43 : f32 to vector<4x2x8x1xf32>
    %147 = arith.divf %145, %146 : vector<4x2x8x1xf32>
    %148 = vector.broadcast %147 : vector<4x2x8x1xf32> to vector<4x2x8x32xf32>
    %149 = arith.subf %132, %148 : vector<4x2x8x32xf32>
    %150 = arith.mulf %149, %149 : vector<4x2x8x32xf32>
    %cst_44 = arith.constant dense<0.000000e+00> : vector<4x2x8xf32>
    %151 = vector.multi_reduction <add>, %150, %cst_44 [3] : vector<4x2x8x32xf32> to vector<4x2x8xf32>
    %152 = vector.shape_cast %151 : vector<4x2x8xf32> to vector<4x2x8x1xf32>
    %cst_45 = arith.constant 3.200000e+01 : f32
    %153 = vector.broadcast %cst_45 : f32 to vector<4x2x8x1xf32>
    %154 = arith.divf %152, %153 : vector<4x2x8x1xf32>
    %155 = vector.broadcast %147 : vector<4x2x8x1xf32> to vector<4x2x8x32xf32>
    %156 = arith.subf %132, %155 : vector<4x2x8x32xf32>
    %cst_46 = arith.constant 9.99999974E-6 : f32
    %157 = vector.broadcast %cst_46 : f32 to vector<4x2x8x1xf32>
    %158 = arith.addf %154, %157 : vector<4x2x8x1xf32>
    %159 = math.rsqrt %158 : vector<4x2x8x1xf32>
    %160 = vector.broadcast %159 : vector<4x2x8x1xf32> to vector<4x2x8x32xf32>
    %161 = arith.mulf %156, %160 : vector<4x2x8x32xf32>
    %162 = vector.shape_cast %135 : vector<32xf32> to vector<1x1x1x32xf32>
    %163 = vector.broadcast %162 : vector<1x1x1x32xf32> to vector<4x2x8x32xf32>
    %164 = arith.mulf %161, %163 : vector<4x2x8x32xf32>
    %165 = vector.shape_cast %137 : vector<32xf32> to vector<1x1x1x32xf32>
    %166 = vector.broadcast %165 : vector<1x1x1x32xf32> to vector<4x2x8x32xf32>
    %167 = arith.addf %164, %166 : vector<4x2x8x32xf32>
    %168 = vector.shape_cast %139 : vector<32xf32> to vector<1x1x1x32xf32>
    %169 = vector.broadcast %168 : vector<1x1x1x32xf32> to vector<4x2x8x32xf32>
    %170 = arith.mulf %167, %169 : vector<4x2x8x32xf32>
    %cst_47 = arith.constant dense<0.000000e+00> : vector<4x2x8xf32>
    %171 = vector.multi_reduction <add>, %170, %cst_47 [3] : vector<4x2x8x32xf32> to vector<4x2x8xf32>
    %cst_48 = arith.constant dense<0xFF800000> : vector<4x2xf32>
    %172 = vector.multi_reduction <maximumf>, %171, %cst_48 [2] : vector<4x2x8xf32> to vector<4x2xf32>
    %173 = vector.shape_cast %172 : vector<4x2xf32> to vector<4x2x1xf32>
    %174 = vector.broadcast %173 : vector<4x2x1xf32> to vector<4x2x8xf32>
    %175 = arith.subf %171, %174 : vector<4x2x8xf32>
    %176 = math.exp %175 : vector<4x2x8xf32>
    %cst_49 = arith.constant dense<0.000000e+00> : vector<4x2xf32>
    %177 = vector.multi_reduction <add>, %176, %cst_49 [2] : vector<4x2x8xf32> to vector<4x2xf32>
    %178 = vector.shape_cast %177 : vector<4x2xf32> to vector<4x2x1xf32>
    %179 = tpu.reciprocal %178 {approx = true} : vector<4x2x1xf32> -> vector<4x2x1xf32>
    %180 = vector.broadcast %179 : vector<4x2x1xf32> to vector<4x2x8xf32>
    %181 = arith.mulf %176, %180 : vector<4x2x8xf32>
    %182 = vector.shape_cast %181 : vector<4x2x8xf32> to vector<4x2x8x1xf32>
    %183 = vector.broadcast %182 : vector<4x2x8x1xf32> to vector<4x2x8x32xf32>
    %184 = arith.mulf %167, %183 : vector<4x2x8x32xf32>
    %cst_50 = arith.constant dense<0.000000e+00> : vector<4x2x32xf32>
    %185 = vector.multi_reduction <add>, %184, %cst_50 [2] : vector<4x2x8x32xf32> to vector<4x2x32xf32>
    %cst_51 = arith.constant dense<0.000000e+00> : vector<4x2xf32>
    %186 = vector.multi_reduction <add>, %185, %cst_51 [2] : vector<4x2x32xf32> to vector<4x2xf32>
    %187 = vector.shape_cast %186 : vector<4x2xf32> to vector<4x2x1xf32>
    %cst_52 = arith.constant 3.200000e+01 : f32
    %188 = vector.broadcast %cst_52 : f32 to vector<4x2x1xf32>
    %189 = arith.divf %187, %188 : vector<4x2x1xf32>
    %190 = vector.broadcast %189 : vector<4x2x1xf32> to vector<4x2x32xf32>
    %191 = arith.subf %185, %190 : vector<4x2x32xf32>
    %192 = arith.mulf %191, %191 : vector<4x2x32xf32>
    %cst_53 = arith.constant dense<0.000000e+00> : vector<4x2xf32>
    %193 = vector.multi_reduction <add>, %192, %cst_53 [2] : vector<4x2x32xf32> to vector<4x2xf32>
    %194 = vector.shape_cast %193 : vector<4x2xf32> to vector<4x2x1xf32>
    %cst_54 = arith.constant 3.200000e+01 : f32
    %195 = vector.broadcast %cst_54 : f32 to vector<4x2x1xf32>
    %196 = arith.divf %194, %195 : vector<4x2x1xf32>
    %197 = vector.broadcast %189 : vector<4x2x1xf32> to vector<4x2x32xf32>
    %198 = arith.subf %185, %197 : vector<4x2x32xf32>
    %cst_55 = arith.constant 9.99999974E-6 : f32
    %199 = vector.broadcast %cst_55 : f32 to vector<4x2x1xf32>
    %200 = arith.addf %196, %199 : vector<4x2x1xf32>
    %201 = math.rsqrt %200 : vector<4x2x1xf32>
    %202 = vector.broadcast %201 : vector<4x2x1xf32> to vector<4x2x32xf32>
    %203 = arith.mulf %198, %202 : vector<4x2x32xf32>
    %204 = vector.shape_cast %141 : vector<32xf32> to vector<1x1x32xf32>
    %205 = vector.broadcast %204 : vector<1x1x32xf32> to vector<4x2x32xf32>
    %206 = arith.mulf %203, %205 : vector<4x2x32xf32>
    %207 = vector.shape_cast %143 : vector<32xf32> to vector<1x1x32xf32>
    %208 = vector.broadcast %207 : vector<1x1x32xf32> to vector<4x2x32xf32>
    %209 = arith.addf %206, %208 : vector<4x2x32xf32>
    %c0_56 = arith.constant 0 : index
    %c0_57 = arith.constant 0 : index
    %210 = vector.load %arg6[%c0_56, %c0_57] : memref<4x32xf32, #tpu.memory_space<vmem>>, vector<4x32xf32>
    %211 = vector.shape_cast %210 : vector<4x32xf32> to vector<4x1x32xf32>
    %212 = vector.broadcast %211 : vector<4x1x32xf32> to vector<4x2x32xf32>
    %213 = arith.mulf %209, %212 : vector<4x2x32xf32>
    %cst_58 = arith.constant dense<0.000000e+00> : vector<4x2xf32>
    %214 = vector.multi_reduction <add>, %213, %cst_58 [2] : vector<4x2x32xf32> to vector<4x2xf32>
    %c0_59 = arith.constant 0 : index
    %c0_60 = arith.constant 0 : index
    %215 = vector.load %arg8[%c0_59, %c0_60] : memref<4x2xf32, #tpu.memory_space<vmem>>, vector<4x2xf32>
    tpu.vector_store %arg8[%c0_59, %c0_60], %214 {strides = array<i32>} : memref<4x2xf32, #tpu.memory_space<vmem>>, vector<4x2xf32>,
    return
  }
  func.func @transform_0(%arg0: i32, %arg1: i32) -> (i32, i32, i32) {
    %c0_i32 = arith.constant 0 : i32
    %c0_i32_0 = arith.constant 0 : i32
    %c0_i32_1 = arith.constant 0 : i32
    return %arg0, %c0_i32, %c0_i32_0 : i32, i32, i32
  }
  func.func @transform_1(%arg0: i32, %arg1: i32) -> (i32, i32, i32) {
    %c0_i32 = arith.constant 0 : i32
    %c0_i32_0 = arith.constant 0 : i32
    %c0_i32_1 = arith.constant 0 : i32
    return %arg0, %c0_i32, %c0_i32_0 : i32, i32, i32
  }
  func.func @transform_2(%arg0: i32, %arg1: i32) -> (i32, i32) {
    %c0_i32 = arith.constant 0 : i32
    %c0_i32_0 = arith.constant 0 : i32
    return %arg1, %c0_i32 : i32, i32
  }
  func.func @transform_3(%arg0: i32, %arg1: i32) -> (i32, i32, i32) {
    %c0_i32 = arith.constant 0 : i32
    %c0_i32_0 = arith.constant 0 : i32
    %c0_i32_1 = arith.constant 0 : i32
    return %arg1, %c0_i32, %c0_i32_0 : i32, i32, i32
  }
  func.func @transform_4(%arg0: i32, %arg1: i32) -> (i32, i32) {
    %c0_i32 = arith.constant 0 : i32
    %c0_i32_0 = arith.constant 0 : i32
    return %arg0, %c0_i32 : i32, i32
  }
  func.func @transform_5(%arg0: i32, %arg1: i32) -> (i32, i32) {
    %c0_i32 = arith.constant 0 : i32
    %c0_i32_0 = arith.constant 0 : i32
    %c0_i32_1 = arith.constant 0 : i32
    return %c0_i32, %c0_i32_0 : i32, i32
  }
  func.func @transform_6(%arg0: i32, %arg1: i32) -> (i32, i32) {
    %c0_i32 = arith.constant 0 : i32
    return %arg0, %arg1 : i32, i32
  }
}

</mosaic_0001>

<llo_original>
// kernel: tpu_custom_call.1
$region0: #{tpu_custom_call.1}
  #allocation0 [shape = 'u32[]', space=smem, size = 0x4, offset = 0x4, fixed_abs, tag = 'smem constant byte address 0x4 - core index']
  #allocation1 [shape = 'u32[144,128]{1,0:T(1,128)}', space=vmem, size = 0x12000, scoped, tag = 'internal scratch']
  %s0 = inlined_call_operand.vmem [shape: f32[4,8,32], index: 0, kind: input, shape index: {}]
  %s1 = inlined_call_operand.vmem [shape: f32[4,8,1], index: 1, kind: input, shape index: {}]
  %s2 = inlined_call_operand.vmem [shape: bf16[16,32], index: 2, kind: input, shape index: {}]
  %s3 = inlined_call_operand.hbm [shape: bf16[2,8,32], index: 3, kind: input, shape index: {}]
  %s4 = inlined_call_operand.hbm [shape: f32[4,32], index: 4, kind: input, shape index: {}]
  %s5 = inlined_call_operand.vmem [shape: f32[8,32], index: 5, kind: input, shape index: {}]
  %s6 = inlined_call_operand.vmem [shape: f32[4,2], index: 6, kind: output, shape index: {}]
  %s7 = sld [smem:[#allocation0]]
  $region42: #{tpu_custom_call.1} parent=0
    _
  %s9 = ssub.s32 1, %s7
  %s10 = scalar_select 0, %s9, %s7
  $region1: #{tpu_custom_call.1} parent=0
    #allocation2 [shape = 'u8[4096]{0}', space=vmem, size = 0x1000, scoped, tag = 'input window, operand 3, single buffered']
    #allocation3 [shape = 's32[1]{0}', space=sflag, size = 0x4, scoped, tag = 'scoped memory for tpu_custom_call.1']
    #allocation4 [shape = 'u8[2048]{0}', space=vmem, size = 0x800, scoped, tag = 'input window, operand 4, single buffered']
    #allocation5 [shape = 's32[1]{0}', space=sflag, size = 0x4, scoped, tag = 'scoped memory for tpu_custom_call.1']
    %11 = vsyncpa [#allocation3], 0
    %12 = vsyncpa [#allocation5], 0
    // Predicated region
    $region2: #{tpu_custom_call.1} parent=1 // pred_check
      _
    $region3: #{tpu_custom_call.1} parent=1 // pred_check_branch
      %14 = sbr.rel (0) target = $region5
    $region4: #{tpu_custom_call.1} parent=1 // pred_region
      _
    $region5: #{tpu_custom_call.1} parent=1 // pred_fallthru
      _
    // Predicated region
    $region6: #{tpu_custom_call.1} parent=1 // pred_check
      _
    $region7: #{tpu_custom_call.1} parent=1 // pred_check_branch
      %16 = sbr.rel (0) target = $region9
    $region8: #{tpu_custom_call.1} parent=1 // pred_region
      _
    $region9: #{tpu_custom_call.1} parent=1 // pred_fallthru
      _
    // Predicated region
    $region10: #{tpu_custom_call.1} parent=1 // pred_check
      _
    $region11: #{tpu_custom_call.1} parent=1 // pred_check_branch
      %18 = sbr.rel (0) target = $region13
    $region12: #{tpu_custom_call.1} parent=1 // pred_region
      _
    $region13: #{tpu_custom_call.1} parent=1 // pred_fallthru
      _
    // Predicated region
    $region14: #{tpu_custom_call.1} parent=1 // pred_check
      _
    $region15: #{tpu_custom_call.1} parent=1 // pred_check_branch
      %20 = sbr.rel (0) target = $region17
    $region16: #{tpu_custom_call.1} parent=1 // pred_region
      %s22 = ssub.s32 128, 128
      %23 = vsyncadd [#allocation3], %s22
      %s24 = sshll.u32 [#allocation2], 4
      %s25 = int_to_ptr.vmem [resolvable:$true] %s24
      %30 = dma.hbm_to_vmem [thread:$0]  %s3, 128, %s25, [#allocation3], 64, 64, 4
    $region17: #{tpu_custom_call.1} parent=1 // pred_fallthru
      _
    // Predicated region
    $region18: #{tpu_custom_call.1} parent=1 // pred_check
      _
    $region19: #{tpu_custom_call.1} parent=1 // pred_check_branch
      %32 = sbr.rel (0) target = $region21
    $region20: #{tpu_custom_call.1} parent=1 // pred_region
      %s34 = ssub.s32 64, 64
      %35 = vsyncadd [#allocation5], %s34
      %s37 = sshll.u32 [#allocation4], 4
      %s38 = int_to_ptr.vmem [resolvable:$true] %s37
      %40 = dma.hbm_to_vmem [thread:$0]  %s4, 64, %s38, [#allocation5]
    $region21: #{tpu_custom_call.1} parent=1 // pred_fallthru
      _
    // Predicated region
    $region22: #{tpu_custom_call.1} parent=1 // pred_check
      _
    $region23: #{tpu_custom_call.1} parent=1 // pred_check_branch
      %42 = sbr.rel (0) target = $region25
    $region24: #{tpu_custom_call.1} parent=1 // pred_region
      _
    $region25: #{tpu_custom_call.1} parent=1 // pred_fallthru
      _
    // Predicated region
    $region26: #{tpu_custom_call.1} parent=1 // pred_check
      _
    $region27: #{tpu_custom_call.1} parent=1 // pred_check_branch
      %44 = sbr.rel (0) target = $region29
    $region28: #{tpu_custom_call.1} parent=1 // pred_region
      %45 = dma.done [#allocation3], 128
    $region29: #{tpu_custom_call.1} parent=1 // pred_fallthru
      _
    // Predicated region
    $region30: #{tpu_custom_call.1} parent=1 // pred_check
      _
    $region31: #{tpu_custom_call.1} parent=1 // pred_check_branch
      %47 = sbr.rel (0) target = $region33
    $region32: #{tpu_custom_call.1} parent=1 // pred_region
      %48 = dma.done [#allocation5], 64
    $region33: #{tpu_custom_call.1} parent=1 // pred_fallthru
      _
    %v50 = vld [vmem:[%s0] sm:$0xff]
    %v51 = vld [vmem:[%s0 + $0x8] sm:$0xff]
    %v52 = vld [vmem:[%s0 + $0x10] sm:$0xff]
    %v53 = vld [vmem:[%s0 + $0x18] sm:$0xff]
    %v54 = vld [vmem:[%s1] sm:$0xff]
    %v55 = vld [vmem:[%s1 + $0x8] sm:$0xff]
    %v56 = vld [vmem:[%s1 + $0x10] sm:$0xff]
    %v57 = vld [vmem:[%s1 + $0x18] sm:$0xff]
    %59 = vset.pattern.permute.xlu0 0
    %60 = vperm.xlu0 %59, %v54
    %v61 = vpop.permute.xlu0 %60
    %64 = vset.pattern.permute.xlu0 0
    %65 = vperm.xlu0 %64, %v55
    %v66 = vpop.permute.xlu0 %65
    %69 = vset.pattern.permute.xlu0 0
    %70 = vperm.xlu0 %69, %v56
    %v71 = vpop.permute.xlu0 %70
    %74 = vset.pattern.permute.xlu0 0
    %75 = vperm.xlu0 %74, %v57
    %v76 = vpop.permute.xlu0 %75
    %v78 = vmul.f32 %v50, %v61
    %v79 = vmul.f32 %v51, %v66
    %v80 = vmul.f32 %v52, %v71
    %v81 = vmul.f32 %v53, %v76
    %v82 = vpack.c.bf16 %v78, %v78
    %v83 = vpack.c.bf16 %v79, %v79
    %v84 = vpack.c.bf16 %v80, %v80
    %v85 = vpack.c.bf16 %v81, %v81
    %v86 = vld [vmem:[%s2] sm:$0xf]
    %v87 = vld [vmem:[%s2 + $0x4] sm:$0xf]
    %v90 = vunpack.c.l.b16 %v86
    %v91 = vunpack.c.l.b16 %v87
    %v92 = vpack.c.b16 %v91, %v90
    %v97 = vunpack.c.l.b16 %v82
    %v98 = vunpack.c.l.b16 %v83
    %v99 = vunpack.c.l.b16 %v84
    %v100 = vunpack.c.l.b16 %v85
    %v101 = vpack.c.b16 %v98, %v97
    %v102 = vpack.c.b16 %v100, %v99
    %vm103 = vcmask 261120
    %v105 = vsel %vm103, %v92, 0
    %v108 = vsel %vm103, %v101, 0
    %v111 = vsel %vm103, %v102, 0
    %113 = vmatprep.subr.bf16.mxu0 0
    %114 = vmatpush1.bf16.xpose.msra.mxu0 %v108
    %115 = vmatprep.subr.bf16.mxu0 0
    %116 = vmatpush1.bf16.xpose.msra.mxu0 %v111
    %117 = vmatprep.subr.bf16.mxu0 0
    %118 = vmatpush1.bf16.xpose.msra.mxu0 0
    %119 = vmatprep.subr.bf16.mxu0 0
    %120 = vmatpush1.bf16.xpose.msra.mxu0 0
    %121 = vmatprep.subr.bf16.mxu0 0
    %122 = vmatpush1.bf16.xpose.msra.mxu0 0
    %123 = vmatprep.subr.bf16.mxu0 0
    %124 = vmatpush1.bf16.xpose.msra.mxu0 0
    %125 = vmatprep.subr.bf16.mxu0 0
    %126 = vmatpush1.bf16.xpose.msra.mxu0 0
    %127 = vmatprep.subr.bf16.mxu0 0
    %128 = vmatpush1.bf16.xpose.msra.mxu0 0
    %129 = vmatprep.subr.bf16.mxu0 0
    %130 = vmatpush1.bf16.xpose.msra.mxu0 0
    %131 = vmatprep.subr.bf16.mxu0 0
    %132 = vmatpush1.bf16.xpose.msra.mxu0 0
    %133 = vmatprep.subr.bf16.mxu0 0
    %134 = vmatpush1.bf16.xpose.msra.mxu0 0
    %135 = vmatprep.subr.bf16.mxu0 0
    %136 = vmatpush1.bf16.xpose.msra.mxu0 0
    %137 = vmatprep.subr.bf16.mxu0 0
    %138 = vmatpush1.bf16.xpose.msra.mxu0 0
    %139 = vmatprep.subr.bf16.mxu0 0
    %140 = vmatpush1.bf16.xpose.msra.mxu0 0
    %141 = vmatprep.subr.bf16.mxu0 0
    %142 = vmatpush1.bf16.xpose.msra.mxu0 0
    %143 = vmatprep.subr.bf16.mxu0 0
    %144 = vmatpush1.bf16.xpose.msra.mxu0 0
    %145 = vmatprep.mubr.bf16.mxu0 0
    %146 = vmatmul.mubr.bf16.gmra.mrb[0].mxu0 %v105
    %v147 = vpop.f32.mrb[0].mxu0
    %v148 = vadd.f32 0.0, %v147
    %v149 = vpop.f32.mrb[0].mxu0
    %v150 = vpop.f32.mrb[0].mxu0
    %v151 = vadd.f32 0.0, %v150
    %v152 = vpop.f32.mrb[0].mxu0
    %153 = vdwg.mxu0
    %v154 = vmul.f32 %v148, 10.0
    %v155 = vmul.f32 %v151, 10.0
    %v156 = vmul.f32 %v154, 1.442695
    %v157 = vpow.pop %v156
    %v158 = vmul.f32 %v155, 1.442695
    %v159 = vpow.pop %v158
    %162 = vrot.lane.b32.xlu0 %v157, 120
    %v163 = vpop.permute.xlu0 %162
    %164 = vrot.lane.b32.xlu0 %v159, 120
    %v165 = vpop.permute.xlu0 %164
    %168 = vrot.lane.b32.xlu0 %v157, 112
    %v169 = vpop.permute.xlu0 %168
    %170 = vrot.lane.b32.xlu0 %v159, 112
    %v171 = vpop.permute.xlu0 %170
    %174 = vrot.lane.b32.xlu0 %v157, 104
    %v175 = vpop.permute.xlu0 %174
    %176 = vrot.lane.b32.xlu0 %v159, 104
    %v177 = vpop.permute.xlu0 %176
    %vm180 = vcmask 64512
    %v181 = vsel %vm180, %v157, 0.0
    %v182 = vrot.slane %v181, 4
    %v183 = vadd.f32 %v181, %v182
    %v184 = vrot.slane %v183, 2
    %v185 = vadd.f32 %v183, %v184
    %v186 = vrot.slane %v185, 1
    %v187 = vadd.f32 %v185, %v186
    %v188 = vsel %vm180, %v159, 0.0
    %v189 = vrot.slane %v188, 4
    %v190 = vadd.f32 %v188, %v189
    %v191 = vrot.slane %v190, 2
    %v192 = vadd.f32 %v190, %v191
    %v193 = vrot.slane %v192, 1
    %v194 = vadd.f32 %v192, %v193
    %v195 = vsel %vm180, %v163, 0.0
    %v196 = vrot.slane %v195, 4
    %v197 = vadd.f32 %v195, %v196
    %v198 = vrot.slane %v197, 2
    %v199 = vadd.f32 %v197, %v198
    %v200 = vrot.slane %v199, 1
    %v201 = vadd.f32 %v199, %v200
    %v202 = vsel %vm180, %v165, 0.0
    %v203 = vrot.slane %v202, 4
    %v204 = vadd.f32 %v202, %v203
    %v205 = vrot.slane %v204, 2
    %v206 = vadd.f32 %v204, %v205
    %v207 = vrot.slane %v206, 1
    %v208 = vadd.f32 %v206, %v207
    %v209 = vsel %vm180, %v169, 0.0
    %v210 = vrot.slane %v209, 4
    %v211 = vadd.f32 %v209, %v210
    %v212 = vrot.slane %v211, 2
    %v213 = vadd.f32 %v211, %v212
    %v214 = vrot.slane %v213, 1
    %v215 = vadd.f32 %v213, %v214
    %v216 = vsel %vm180, %v171, 0.0
    %v217 = vrot.slane %v216, 4
    %v218 = vadd.f32 %v216, %v217
    %v219 = vrot.slane %v218, 2
    %v220 = vadd.f32 %v218, %v219
    %v221 = vrot.slane %v220, 1
    %v222 = vadd.f32 %v220, %v221
    %v223 = vsel %vm180, %v175, 0.0
    %v224 = vrot.slane %v223, 4
    %v225 = vadd.f32 %v223, %v224
    %v226 = vrot.slane %v225, 2
    %v227 = vadd.f32 %v225, %v226
    %v228 = vrot.slane %v227, 1
    %v229 = vadd.f32 %v227, %v228
    %v230 = vsel %vm180, %v177, 0.0
    %v231 = vrot.slane %v230, 4
    %v232 = vadd.f32 %v230, %v231
    %v233 = vrot.slane %v232, 2
    %v234 = vadd.f32 %v232, %v233
    %v235 = vrot.slane %v234, 1
    %v236 = vadd.f32 %v234, %v235
    %v237 = vmax.f32 %v187, 1e-09
    %v238 = vmax.f32 %v194, 1e-09
    %v239 = vmax.f32 %v201, 1e-09
    %v240 = vmax.f32 %v208, 1e-09
    %v241 = vmax.f32 %v215, 1e-09
    %v242 = vmax.f32 %v222, 1e-09
    %v243 = vmax.f32 %v229, 1e-09
    %v244 = vmax.f32 %v236, 1e-09
    %v245 = vrcp.pop %v237
    %v246 = vmul.f32 0.125, %v245
    %v247 = vrcp.pop %v238
    %v248 = vmul.f32 0.125, %v247
    %v249 = vrcp.pop %v239
    %v250 = vmul.f32 0.125, %v249
    %v251 = vrcp.pop %v240
    %v252 = vmul.f32 0.125, %v251
    %v253 = vrcp.pop %v241
    %v254 = vmul.f32 0.125, %v253
    %v255 = vrcp.pop %v242
    %v256 = vmul.f32 0.125, %v255
    %v257 = vrcp.pop %v243
    %v258 = vmul.f32 0.125, %v257
    %v259 = vrcp.pop %v244
    %v260 = vmul.f32 0.125, %v259
    %v261 = vmul.f32 %v157, %v246
    %v262 = vmul.f32 %v159, %v248
    %v263 = vmul.f32 %v163, %v250
    %v264 = vmul.f32 %v165, %v252
    %v265 = vmul.f32 %v169, %v254
    %v266 = vmul.f32 %v171, %v256
    %v267 = vmul.f32 %v175, %v258
    %v268 = vmul.f32 %v177, %v260
    %v269 = vsel %vm180, %v261, 0.0
    %270 = vadd.xlane.f32.xlu0 %v269
    %v271 = vpop.xlane.xlu0 %270
    %v272 = vsel %vm180, %v262, 0.0
    %273 = vadd.xlane.f32.xlu0 %v272
    %v274 = vpop.xlane.xlu0 %273
    %v275 = vsel %vm180, %v263, 0.0
    %276 = vadd.xlane.f32.xlu0 %v275
    %v277 = vpop.xlane.xlu0 %276
    %v278 = vsel %vm180, %v264, 0.0
    %279 = vadd.xlane.f32.xlu0 %v278
    %v280 = vpop.xlane.xlu0 %279
    %v281 = vsel %vm180, %v265, 0.0
    %282 = vadd.xlane.f32.xlu0 %v281
    %v283 = vpop.xlane.xlu0 %282
    %v284 = vsel %vm180, %v266, 0.0
    %285 = vadd.xlane.f32.xlu0 %v284
    %v286 = vpop.xlane.xlu0 %285
    %v287 = vsel %vm180, %v267, 0.0
    %288 = vadd.xlane.f32.xlu0 %v287
    %v289 = vpop.xlane.xlu0 %288
    %v290 = vsel %vm180, %v268, 0.0
    %291 = vadd.xlane.f32.xlu0 %v290
    %v292 = vpop.xlane.xlu0 %291
    %v293 = vmax.f32 %v271, 1e-09
    %v294 = vmax.f32 %v274, 1e-09
    %v295 = vmax.f32 %v277, 1e-09
    %v296 = vmax.f32 %v280, 1e-09
    %v297 = vmax.f32 %v283, 1e-09
    %v298 = vmax.f32 %v286, 1e-09
    %v299 = vmax.f32 %v289, 1e-09
    %v300 = vmax.f32 %v292, 1e-09
    %v301 = vrcp.pop %v293
    %v302 = vmul.f32 0.125, %v301
    %v303 = vrcp.pop %v294
    %v304 = vmul.f32 0.125, %v303
    %v305 = vrcp.pop %v295
    %v306 = vmul.f32 0.125, %v305
    %v307 = vrcp.pop %v296
    %v308 = vmul.f32 0.125, %v307
    %v309 = vrcp.pop %v297
    %v310 = vmul.f32 0.125, %v309
    %v311 = vrcp.pop %v298
    %v312 = vmul.f32 0.125, %v311
    %v313 = vrcp.pop %v299
    %v314 = vmul.f32 0.125, %v313
    %v315 = vrcp.pop %v300
    %v316 = vmul.f32 0.125, %v315
    %v317 = vmul.f32 %v157, %v302
    %v318 = vmul.f32 %v159, %v304
    %v319 = vmul.f32 %v163, %v306
    %v320 = vmul.f32 %v165, %v308
    %v321 = vmul.f32 %v169, %v310
    %v322 = vmul.f32 %v171, %v312
    %v323 = vmul.f32 %v175, %v314
    %v324 = vmul.f32 %v177, %v316
    %v325 = vsel %vm180, %v317, 0.0
    %v326 = vrot.slane %v325, 4
    %v327 = vadd.f32 %v325, %v326
    %v328 = vrot.slane %v327, 2
    %v329 = vadd.f32 %v327, %v328
    %v330 = vrot.slane %v329, 1
    %v331 = vadd.f32 %v329, %v330
    %v332 = vsel %vm180, %v318, 0.0
    %v333 = vrot.slane %v332, 4
    %v334 = vadd.f32 %v332, %v333
    %v335 = vrot.slane %v334, 2
    %v336 = vadd.f32 %v334, %v335
    %v337 = vrot.slane %v336, 1
    %v338 = vadd.f32 %v336, %v337
    %v339 = vsel %vm180, %v319, 0.0
    %v340 = vrot.slane %v339, 4
    %v341 = vadd.f32 %v339, %v340
    %v342 = vrot.slane %v341, 2
    %v343 = vadd.f32 %v341, %v342
    %v344 = vrot.slane %v343, 1
    %v345 = vadd.f32 %v343, %v344
    %v346 = vsel %vm180, %v320, 0.0
    %v347 = vrot.slane %v346, 4
    %v348 = vadd.f32 %v346, %v347
    %v349 = vrot.slane %v348, 2
    %v350 = vadd.f32 %v348, %v349
    %v351 = vrot.slane %v350, 1
    %v352 = vadd.f32 %v350, %v351
    %v353 = vsel %vm180, %v321, 0.0
    %v354 = vrot.slane %v353, 4
    %v355 = vadd.f32 %v353, %v354
    %v356 = vrot.slane %v355, 2
    %v357 = vadd.f32 %v355, %v356
    %v358 = vrot.slane %v357, 1
    %v359 = vadd.f32 %v357, %v358
    %v360 = vsel %vm180, %v322, 0.0
    %v361 = vrot.slane %v360, 4
    %v362 = vadd.f32 %v360, %v361
    %v363 = vrot.slane %v362, 2
    %v364 = vadd.f32 %v362, %v363
    %v365 = vrot.slane %v364, 1
    %v366 = vadd.f32 %v364, %v365
    %v367 = vsel %vm180, %v323, 0.0
    %v368 = vrot.slane %v367, 4
    %v369 = vadd.f32 %v367, %v368
    %v370 = vrot.slane %v369, 2
    %v371 = vadd.f32 %v369, %v370
    %v372 = vrot.slane %v371, 1
    %v373 = vadd.f32 %v371, %v372
    %v374 = vsel %vm180, %v324, 0.0
    %v375 = vrot.slane %v374, 4
    %v376 = vadd.f32 %v374, %v375
    %v377 = vrot.slane %v376, 2
    %v378 = vadd.f32 %v376, %v377
    %v379 = vrot.slane %v378, 1
    %v380 = vadd.f32 %v378, %v379
    %v381 = vmax.f32 %v331, 1e-09
    %v382 = vmax.f32 %v338, 1e-09
    %v383 = vmax.f32 %v345, 1e-09
    %v384 = vmax.f32 %v352, 1e-09
    %v385 = vmax.f32 %v359, 1e-09
    %v386 = vmax.f32 %v366, 1e-09
    %v387 = vmax.f32 %v373, 1e-09
    %v388 = vmax.f32 %v380, 1e-09
    %v389 = vrcp.pop %v381
    %v390 = vmul.f32 0.125, %v389
    %v391 = vrcp.pop %v382
    %v392 = vmul.f32 0.125, %v391
    %v393 = vrcp.pop %v383
    %v394 = vmul.f32 0.125, %v393
    %v395 = vrcp.pop %v384
    %v396 = vmul.f32 0.125, %v395
    %v397 = vrcp.pop %v385
    %v398 = vmul.f32 0.125, %v397
    %v399 = vrcp.pop %v386
    %v400 = vmul.f32 0.125, %v399
    %v401 = vrcp.pop %v387
    %v402 = vmul.f32 0.125, %v401
    %v403 = vrcp.pop %v388
    %v404 = vmul.f32 0.125, %v403
    %v405 = vmul.f32 %v157, %v390
    %v406 = vmul.f32 %v159, %v392
    %v407 = vmul.f32 %v163, %v394
    %v408 = vmul.f32 %v165, %v396
    %v409 = vmul.f32 %v169, %v398
    %v410 = vmul.f32 %v171, %v400
    %v411 = vmul.f32 %v175, %v402
    %v412 = vmul.f32 %v177, %v404
    %v413 = vsel %vm180, %v405, 0.0
    %414 = vadd.xlane.f32.xlu0 %v413
    %v415 = vpop.xlane.xlu0 %414
    %v416 = vsel %vm180, %v406, 0.0
    %417 = vadd.xlane.f32.xlu0 %v416
    %v418 = vpop.xlane.xlu0 %417
    %v419 = vsel %vm180, %v407, 0.0
    %420 = vadd.xlane.f32.xlu0 %v419
    %v421 = vpop.xlane.xlu0 %420
    %v422 = vsel %vm180, %v408, 0.0
    %423 = vadd.xlane.f32.xlu0 %v422
    %v424 = vpop.xlane.xlu0 %423
    %v425 = vsel %vm180, %v409, 0.0
    %426 = vadd.xlane.f32.xlu0 %v425
    %v427 = vpop.xlane.xlu0 %426
    %v428 = vsel %vm180, %v410, 0.0
    %429 = vadd.xlane.f32.xlu0 %v428
    %v430 = vpop.xlane.xlu0 %429
    %v431 = vsel %vm180, %v411, 0.0
    %432 = vadd.xlane.f32.xlu0 %v431
    %v433 = vpop.xlane.xlu0 %432
    %v434 = vsel %vm180, %v412, 0.0
    %435 = vadd.xlane.f32.xlu0 %v434
    %v436 = vpop.xlane.xlu0 %435
    %v437 = vmax.f32 %v415, 1e-09
    %v438 = vmax.f32 %v418, 1e-09
    %v439 = vmax.f32 %v421, 1e-09
    %v440 = vmax.f32 %v424, 1e-09
    %v441 = vmax.f32 %v427, 1e-09
    %v442 = vmax.f32 %v430, 1e-09
    %v443 = vmax.f32 %v433, 1e-09
    %v444 = vmax.f32 %v436, 1e-09
    %v445 = vrcp.pop %v437
    %v446 = vmul.f32 0.125, %v445
    %v447 = vrcp.pop %v438
    %v448 = vmul.f32 0.125, %v447
    %v449 = vrcp.pop %v439
    %v450 = vmul.f32 0.125, %v449
    %v451 = vrcp.pop %v440
    %v452 = vmul.f32 0.125, %v451
    %v453 = vrcp.pop %v441
    %v454 = vmul.f32 0.125, %v453
    %v455 = vrcp.pop %v442
    %v456 = vmul.f32 0.125, %v455
    %v457 = vrcp.pop %v443
    %v458 = vmul.f32 0.125, %v457
    %v459 = vrcp.pop %v444
    %v460 = vmul.f32 0.125, %v459
    %v461 = vmul.f32 %v157, %v446
    %v462 = vmul.f32 %v159, %v448
    %v463 = vmul.f32 %v163, %v450
    %v464 = vmul.f32 %v165, %v452
    %v465 = vmul.f32 %v169, %v454
    %v466 = vmul.f32 %v171, %v456
    %v467 = vmul.f32 %v175, %v458
    %v468 = vmul.f32 %v177, %v460
    %v469 = vsel %vm180, %v461, 0.0
    %v470 = vrot.slane %v469, 4
    %v471 = vadd.f32 %v469, %v470
    %v472 = vrot.slane %v471, 2
    %v473 = vadd.f32 %v471, %v472
    %v474 = vrot.slane %v473, 1
    %v475 = vadd.f32 %v473, %v474
    %v476 = vsel %vm180, %v462, 0.0
    %v477 = vrot.slane %v476, 4
    %v478 = vadd.f32 %v476, %v477
    %v479 = vrot.slane %v478, 2
    %v480 = vadd.f32 %v478, %v479
    %v481 = vrot.slane %v480, 1
    %v482 = vadd.f32 %v480, %v481
    %v483 = vsel %vm180, %v463, 0.0
    %v484 = vrot.slane %v483, 4
    %v485 = vadd.f32 %v483, %v484
    %v486 = vrot.slane %v485, 2
    %v487 = vadd.f32 %v485, %v486
    %v488 = vrot.slane %v487, 1
    %v489 = vadd.f32 %v487, %v488
    %v490 = vsel %vm180, %v464, 0.0
    %v491 = vrot.slane %v490, 4
    %v492 = vadd.f32 %v490, %v491
    %v493 = vrot.slane %v492, 2
    %v494 = vadd.f32 %v492, %v493
    %v495 = vrot.slane %v494, 1
    %v496 = vadd.f32 %v494, %v495
    %v497 = vsel %vm180, %v465, 0.0
    %v498 = vrot.slane %v497, 4
    %v499 = vadd.f32 %v497, %v498
    %v500 = vrot.slane %v499, 2
    %v501 = vadd.f32 %v499, %v500
    %v502 = vrot.slane %v501, 1
    %v503 = vadd.f32 %v501, %v502
    %v504 = vsel %vm180, %v466, 0.0
    %v505 = vrot.slane %v504, 4
    %v506 = vadd.f32 %v504, %v505
    %v507 = vrot.slane %v506, 2
    %v508 = vadd.f32 %v506, %v507
    %v509 = vrot.slane %v508, 1
    %v510 = vadd.f32 %v508, %v509
    %v511 = vsel %vm180, %v467, 0.0
    %v512 = vrot.slane %v511, 4
    %v513 = vadd.f32 %v511, %v512
    %v514 = vrot.slane %v513, 2
    %v515 = vadd.f32 %v513, %v514
    %v516 = vrot.slane %v515, 1
    %v517 = vadd.f32 %v515, %v516
    %v518 = vsel %vm180, %v468, 0.0
    %v519 = vrot.slane %v518, 4
    %v520 = vadd.f32 %v518, %v519
    %v521 = vrot.slane %v520, 2
    %v522 = vadd.f32 %v520, %v521
    %v523 = vrot.slane %v522, 1
    %v524 = vadd.f32 %v522, %v523
    %v525 = vmax.f32 %v475, 1e-09
    %v526 = vmax.f32 %v482, 1e-09
    %v527 = vmax.f32 %v489, 1e-09
    %v528 = vmax.f32 %v496, 1e-09
    %v529 = vmax.f32 %v503, 1e-09
    %v530 = vmax.f32 %v510, 1e-09
    %v531 = vmax.f32 %v517, 1e-09
    %v532 = vmax.f32 %v524, 1e-09
    %v533 = vrcp.pop %v525
    %v534 = vmul.f32 0.125, %v533
    %v535 = vrcp.pop %v526
    %v536 = vmul.f32 0.125, %v535
    %v537 = vrcp.pop %v527
    %v538 = vmul.f32 0.125, %v537
    %v539 = vrcp.pop %v528
    %v540 = vmul.f32 0.125, %v539
    %v541 = vrcp.pop %v529
    %v542 = vmul.f32 0.125, %v541
    %v543 = vrcp.pop %v530
    %v544 = vmul.f32 0.125, %v543
    %v545 = vrcp.pop %v531
    %v546 = vmul.f32 0.125, %v545
    %v547 = vrcp.pop %v532
    %v548 = vmul.f32 0.125, %v547
    %v549 = vmul.f32 %v157, %v534
    %v550 = vmul.f32 %v159, %v536
    %v551 = vmul.f32 %v163, %v538
    %v552 = vmul.f32 %v165, %v540
    %v553 = vmul.f32 %v169, %v542
    %v554 = vmul.f32 %v171, %v544
    %v555 = vmul.f32 %v175, %v546
    %v556 = vmul.f32 %v177, %v548
    %v557 = vsel %vm180, %v549, 0.0
    %558 = vadd.xlane.f32.xlu0 %v557
    %v559 = vpop.xlane.xlu0 %558
    %v560 = vsel %vm180, %v550, 0.0
    %561 = vadd.xlane.f32.xlu0 %v560
    %v562 = vpop.xlane.xlu0 %561
    %v563 = vsel %vm180, %v551, 0.0
    %564 = vadd.xlane.f32.xlu0 %v563
    %v565 = vpop.xlane.xlu0 %564
    %v566 = vsel %vm180, %v552, 0.0
    %567 = vadd.xlane.f32.xlu0 %v566
    %v568 = vpop.xlane.xlu0 %567
    %v569 = vsel %vm180, %v553, 0.0
    %570 = vadd.xlane.f32.xlu0 %v569
    %v571 = vpop.xlane.xlu0 %570
    %v572 = vsel %vm180, %v554, 0.0
    %573 = vadd.xlane.f32.xlu0 %v572
    %v574 = vpop.xlane.xlu0 %573
    %v575 = vsel %vm180, %v555, 0.0
    %576 = vadd.xlane.f32.xlu0 %v575
    %v577 = vpop.xlane.xlu0 %576
    %v578 = vsel %vm180, %v556, 0.0
    %579 = vadd.xlane.f32.xlu0 %v578
    %v580 = vpop.xlane.xlu0 %579
    %v581 = vmax.f32 %v559, 1e-09
    %v582 = vmax.f32 %v562, 1e-09
    %v583 = vmax.f32 %v565, 1e-09
    %v584 = vmax.f32 %v568, 1e-09
    %v585 = vmax.f32 %v571, 1e-09
    %v586 = vmax.f32 %v574, 1e-09
    %v587 = vmax.f32 %v577, 1e-09
    %v588 = vmax.f32 %v580, 1e-09
    %v589 = vrcp.pop %v581
    %v590 = vmul.f32 0.125, %v589
    %v591 = vrcp.pop %v582
    %v592 = vmul.f32 0.125, %v591
    %v593 = vrcp.pop %v583
    %v594 = vmul.f32 0.125, %v593
    %v595 = vrcp.pop %v584
    %v596 = vmul.f32 0.125, %v595
    %v597 = vrcp.pop %v585
    %v598 = vmul.f32 0.125, %v597
    %v599 = vrcp.pop %v586
    %v600 = vmul.f32 0.125, %v599
    %v601 = vrcp.pop %v587
    %v602 = vmul.f32 0.125, %v601
    %v603 = vrcp.pop %v588
    %v604 = vmul.f32 0.125, %v603
    %v605 = vmul.f32 %v549, %v590
    %v606 = vmul.f32 %v550, %v592
    %v607 = vmul.f32 %v551, %v594
    %v608 = vmul.f32 %v552, %v596
    %v609 = vmul.f32 %v553, %v598
    %v610 = vmul.f32 %v554, %v600
    %v611 = vmul.f32 %v555, %v602
    %v612 = vmul.f32 %v556, %v604
    %v613 = vmul.f32 %v605, %v605
    %v614 = vmul.f32 %v606, %v606
    %v615 = vmul.f32 %v607, %v607
    %v616 = vmul.f32 %v608, %v608
    %v617 = vmul.f32 %v609, %v609
    %v618 = vmul.f32 %v610, %v610
    %v619 = vmul.f32 %v611, %v611
    %v620 = vmul.f32 %v612, %v612
    %v621 = vsel %vm180, %v613, 0.0
    %v622 = vrot.slane %v621, 4
    %v623 = vadd.f32 %v621, %v622
    %v624 = vrot.slane %v623, 2
    %v625 = vadd.f32 %v623, %v624
    %v626 = vrot.slane %v625, 1
    %v627 = vadd.f32 %v625, %v626
    %v628 = vsel %vm180, %v614, 0.0
    %v629 = vrot.slane %v628, 4
    %v630 = vadd.f32 %v628, %v629
    %v631 = vrot.slane %v630, 2
    %v632 = vadd.f32 %v630, %v631
    %v633 = vrot.slane %v632, 1
    %v634 = vadd.f32 %v632, %v633
    %v635 = vsel %vm180, %v615, 0.0
    %v636 = vrot.slane %v635, 4
    %v637 = vadd.f32 %v635, %v636
    %v638 = vrot.slane %v637, 2
    %v639 = vadd.f32 %v637, %v638
    %v640 = vrot.slane %v639, 1
    %v641 = vadd.f32 %v639, %v640
    %v642 = vsel %vm180, %v616, 0.0
    %v643 = vrot.slane %v642, 4
    %v644 = vadd.f32 %v642, %v643
    %v645 = vrot.slane %v644, 2
    %v646 = vadd.f32 %v644, %v645
    %v647 = vrot.slane %v646, 1
    %v648 = vadd.f32 %v646, %v647
    %v649 = vsel %vm180, %v617, 0.0
    %v650 = vrot.slane %v649, 4
    %v651 = vadd.f32 %v649, %v650
    %v652 = vrot.slane %v651, 2
    %v653 = vadd.f32 %v651, %v652
    %v654 = vrot.slane %v653, 1
    %v655 = vadd.f32 %v653, %v654
    %v656 = vsel %vm180, %v618, 0.0
    %v657 = vrot.slane %v656, 4
    %v658 = vadd.f32 %v656, %v657
    %v659 = vrot.slane %v658, 2
    %v660 = vadd.f32 %v658, %v659
    %v661 = vrot.slane %v660, 1
    %v662 = vadd.f32 %v660, %v661
    %v663 = vsel %vm180, %v619, 0.0
    %v664 = vrot.slane %v663, 4
    %v665 = vadd.f32 %v663, %v664
    %v666 = vrot.slane %v665, 2
    %v667 = vadd.f32 %v665, %v666
    %v668 = vrot.slane %v667, 1
    %v669 = vadd.f32 %v667, %v668
    %v670 = vsel %vm180, %v620, 0.0
    %v671 = vrot.slane %v670, 4
    %v672 = vadd.f32 %v670, %v671
    %v673 = vrot.slane %v672, 2
    %v674 = vadd.f32 %v672, %v673
    %v675 = vrot.slane %v674, 1
    %v676 = vadd.f32 %v674, %v675
    %v677 = vmax.f32 %v627, 1e-24
    %v678 = vmax.f32 %v634, 1e-24
    %v679 = vmax.f32 %v641, 1e-24
    %v680 = vmax.f32 %v648, 1e-24
    %v681 = vmax.f32 %v655, 1e-24
    %v682 = vmax.f32 %v662, 1e-24
    %v683 = vmax.f32 %v669, 1e-24
    %v684 = vmax.f32 %v676, 1e-24
    %v685 = vrsqrt.pop %v677
    %v686 = vrsqrt.pop %v678
    %v687 = vrsqrt.pop %v679
    %v688 = vrsqrt.pop %v680
    %v689 = vrsqrt.pop %v681
    %v690 = vrsqrt.pop %v682
    %v691 = vrsqrt.pop %v683
    %v692 = vrsqrt.pop %v684
    %v693 = vmul.f32 %v605, %v685
    %v694 = vmul.f32 %v606, %v686
    %v695 = vmul.f32 %v607, %v687
    %v696 = vmul.f32 %v608, %v688
    %v697 = vmul.f32 %v609, %v689
    %v698 = vmul.f32 %v610, %v690
    %v699 = vmul.f32 %v611, %v691
    %v700 = vmul.f32 %v612, %v692
    %v701 = vpack.c.bf16 %v693, %v693
    %v702 = vpack.c.bf16 %v694, %v694
    %v703 = vpack.c.bf16 %v695, %v695
    %v704 = vpack.c.bf16 %v696, %v696
    %v705 = vpack.c.bf16 %v697, %v697
    %v706 = vpack.c.bf16 %v698, %v698
    %v707 = vpack.c.bf16 %v699, %v699
    %v708 = vpack.c.bf16 %v700, %v700
    %v709 = vld [vmem:[#allocation2] sm:$0xf]
    %v710 = vld [vmem:[#allocation2 + $0x4] sm:$0xf]
    %711 = vxpose.xlu0.c.b16.start [1/8] %v701, 128
    %712 = vxpose.xlu0.c.b16.cont [2/8] 0, 128
    %713 = vxpose.xlu0.c.b16.cont [3/8] 0, 128
    %714 = vxpose.xlu0.c.b16.cont [4/8] 0, 128
    %715 = vxpose.xlu0.c.b16.cont [5/8] 0, 128
    %716 = vxpose.xlu0.c.b16.cont [6/8] 0, 128
    %717 = vxpose.xlu0.c.b16.cont [7/8] 0, 128
    %718 = vxpose.xlu0.c.b16.end [8/8] 0, 128
    %v719 = vpop.trf.xlu0
    %v720 = vpop.trf.xlu0
    %v721 = vpop.trf.xlu0
    %v722 = vpop.trf.xlu0
    %v723 = vpop.trf.xlu0
    %v724 = vpop.trf.xlu0
    %v725 = vpop.trf.xlu0
    %v726 = vpop.trf.xlu0
    %v728 = vsel %vm180, %v719, 0
    %vm730 = vcmask 1043456
    %v732 = vsel %vm730, %v709, 0
    %734 = vmatprep.subr.bf16.mxu0 0
    %735 = vmatpush1.bf16.msra.mxu0 %v732
    %736 = vmatprep.subr.bf16.mxu0 0
    %737 = vmatpush1.bf16.msra.mxu0 0
    %738 = vmatprep.subr.bf16.mxu0 0
    %739 = vmatpush1.bf16.msra.mxu0 0
    %740 = vmatprep.subr.bf16.mxu0 0
    %741 = vmatpush1.bf16.msra.mxu0 0
    %742 = vmatprep.subr.bf16.mxu0 0
    %743 = vmatpush1.bf16.msra.mxu0 0
    %744 = vmatprep.subr.bf16.mxu0 0
    %745 = vmatpush1.bf16.msra.mxu0 0
    %746 = vmatprep.subr.bf16.mxu0 0
    %747 = vmatpush1.bf16.msra.mxu0 0
    %748 = vmatprep.subr.bf16.mxu0 0
    %749 = vmatpush1.bf16.msra.mxu0 0
    %750 = vmatprep.subr.bf16.mxu0 0
    %751 = vmatpush1.bf16.msra.mxu0 0
    %752 = vmatprep.subr.bf16.mxu0 0
    %753 = vmatpush1.bf16.msra.mxu0 0
    %754 = vmatprep.subr.bf16.mxu0 0
    %755 = vmatpush1.bf16.msra.mxu0 0
    %756 = vmatprep.subr.bf16.mxu0 0
    %757 = vmatpush1.bf16.msra.mxu0 0
    %758 = vmatprep.subr.bf16.mxu0 0
    %759 = vmatpush1.bf16.msra.mxu0 0
    %760 = vmatprep.subr.bf16.mxu0 0
    %761 = vmatpush1.bf16.msra.mxu0 0
    %762 = vmatprep.subr.bf16.mxu0 0
    %763 = vmatpush1.bf16.msra.mxu0 0
    %764 = vmatprep.subr.bf16.mxu0 0
    %765 = vmatpush1.bf16.msra.mxu0 0
    %766 = vmatprep.mubr.bf16.mxu0 0
    %767 = vmatmul.mubr.bf16.gmra.mrb[0].mxu0 %v728
    %v768 = vpop.f32.mrb[0].mxu0
    %v769 = vadd.f32 %v50, %v768
    %v770 = vpop.f32.mrb[0].mxu0
    %v771 = vpop.f32.mrb[0].mxu0
    %v772 = vpop.f32.mrb[0].mxu0
    %773 = vdwg.mxu0
    %774 = vxpose.xlu0.c.b16.start [1/8] %v702, 128
    %775 = vxpose.xlu0.c.b16.cont [2/8] 0, 128
    %776 = vxpose.xlu0.c.b16.cont [3/8] 0, 128
    %777 = vxpose.xlu0.c.b16.cont [4/8] 0, 128
    %778 = vxpose.xlu0.c.b16.cont [5/8] 0, 128
    %779 = vxpose.xlu0.c.b16.cont [6/8] 0, 128
    %780 = vxpose.xlu0.c.b16.cont [7/8] 0, 128
    %781 = vxpose.xlu0.c.b16.end [8/8] 0, 128
    %v782 = vpop.trf.xlu0
    %v783 = vpop.trf.xlu0
    %v784 = vpop.trf.xlu0
    %v785 = vpop.trf.xlu0
    %v786 = vpop.trf.xlu0
    %v787 = vpop.trf.xlu0
    %v788 = vpop.trf.xlu0
    %v789 = vpop.trf.xlu0
    %v791 = vsel %vm180, %v782, 0
    %v794 = vsel %vm730, %v710, 0
    %796 = vmatprep.subr.bf16.mxu0 0
    %797 = vmatpush1.bf16.msra.mxu0 %v794
    %798 = vmatprep.subr.bf16.mxu0 0
    %799 = vmatpush1.bf16.msra.mxu0 0
    %800 = vmatprep.subr.bf16.mxu0 0
    %801 = vmatpush1.bf16.msra.mxu0 0
    %802 = vmatprep.subr.bf16.mxu0 0
    %803 = vmatpush1.bf16.msra.mxu0 0
    %804 = vmatprep.subr.bf16.mxu0 0
    %805 = vmatpush1.bf16.msra.mxu0 0
    %806 = vmatprep.subr.bf16.mxu0 0
    %807 = vmatpush1.bf16.msra.mxu0 0
    %808 = vmatprep.subr.bf16.mxu0 0
    %809 = vmatpush1.bf16.msra.mxu0 0
    %810 = vmatprep.subr.bf16.mxu0 0
    %811 = vmatpush1.bf16.msra.mxu0 0
    %812 = vmatprep.subr.bf16.mxu0 0
    %813 = vmatpush1.bf16.msra.mxu0 0
    %814 = vmatprep.subr.bf16.mxu0 0
    %815 = vmatpush1.bf16.msra.mxu0 0
    %816 = vmatprep.subr.bf16.mxu0 0
    %817 = vmatpush1.bf16.msra.mxu0 0
    %818 = vmatprep.subr.bf16.mxu0 0
    %819 = vmatpush1.bf16.msra.mxu0 0
    %820 = vmatprep.subr.bf16.mxu0 0
    %821 = vmatpush1.bf16.msra.mxu0 0
    %822 = vmatprep.subr.bf16.mxu0 0
    %823 = vmatpush1.bf16.msra.mxu0 0
    %824 = vmatprep.subr.bf16.mxu0 0
    %825 = vmatpush1.bf16.msra.mxu0 0
    %826 = vmatprep.subr.bf16.mxu0 0
    %827 = vmatpush1.bf16.msra.mxu0 0
    %828 = vmatprep.mubr.bf16.mxu0 0
    %829 = vmatmul.mubr.bf16.gmra.mrb[0].mxu0 %v791
    %v830 = vpop.f32.mrb[0].mxu0
    %v831 = vadd.f32 %v50, %v830
    %v832 = vpop.f32.mrb[0].mxu0
    %v833 = vpop.f32.mrb[0].mxu0
    %v834 = vpop.f32.mrb[0].mxu0
    %835 = vdwg.mxu0
    %836 = vxpose.xlu0.c.b16.start [1/8] %v703, 128
    %837 = vxpose.xlu0.c.b16.cont [2/8] 0, 128
    %838 = vxpose.xlu0.c.b16.cont [3/8] 0, 128
    %839 = vxpose.xlu0.c.b16.cont [4/8] 0, 128
    %840 = vxpose.xlu0.c.b16.cont [5/8] 0, 128
    %841 = vxpose.xlu0.c.b16.cont [6/8] 0, 128
    %842 = vxpose.xlu0.c.b16.cont [7/8] 0, 128
    %843 = vxpose.xlu0.c.b16.end [8/8] 0, 128
    %v844 = vpop.trf.xlu0
    %v845 = vpop.trf.xlu0
    %v846 = vpop.trf.xlu0
    %v847 = vpop.trf.xlu0
    %v848 = vpop.trf.xlu0
    %v849 = vpop.trf.xlu0
    %v850 = vpop.trf.xlu0
    %v851 = vpop.trf.xlu0
    %v853 = vsel %vm180, %v844, 0
    %855 = vmatprep.subr.bf16.mxu0 0
    %856 = vmatpush1.bf16.msra.mxu0 %v732
    %857 = vmatprep.subr.bf16.mxu0 0
    %858 = vmatpush1.bf16.msra.mxu0 0
    %859 = vmatprep.subr.bf16.mxu0 0
    %860 = vmatpush1.bf16.msra.mxu0 0
    %861 = vmatprep.subr.bf16.mxu0 0
    %862 = vmatpush1.bf16.msra.mxu0 0
    %863 = vmatprep.subr.bf16.mxu0 0
    %864 = vmatpush1.bf16.msra.mxu0 0
    %865 = vmatprep.subr.bf16.mxu0 0
    %866 = vmatpush1.bf16.msra.mxu0 0
    %867 = vmatprep.subr.bf16.mxu0 0
    %868 = vmatpush1.bf16.msra.mxu0 0
    %869 = vmatprep.subr.bf16.mxu0 0
    %870 = vmatpush1.bf16.msra.mxu0 0
    %871 = vmatprep.subr.bf16.mxu0 0
    %872 = vmatpush1.bf16.msra.mxu0 0
    %873 = vmatprep.subr.bf16.mxu0 0
    %874 = vmatpush1.bf16.msra.mxu0 0
    %875 = vmatprep.subr.bf16.mxu0 0
    %876 = vmatpush1.bf16.msra.mxu0 0
    %877 = vmatprep.subr.bf16.mxu0 0
    %878 = vmatpush1.bf16.msra.mxu0 0
    %879 = vmatprep.subr.bf16.mxu0 0
    %880 = vmatpush1.bf16.msra.mxu0 0
    %881 = vmatprep.subr.bf16.mxu0 0
    %882 = vmatpush1.bf16.msra.mxu0 0
    %883 = vmatprep.subr.bf16.mxu0 0
    %884 = vmatpush1.bf16.msra.mxu0 0
    %885 = vmatprep.subr.bf16.mxu0 0
    %886 = vmatpush1.bf16.msra.mxu0 0
    %887 = vmatprep.mubr.bf16.mxu0 0
    %888 = vmatmul.mubr.bf16.gmra.mrb[0].mxu0 %v853
    %v889 = vpop.f32.mrb[0].mxu0
    %v890 = vadd.f32 %v51, %v889
    %v891 = vpop.f32.mrb[0].mxu0
    %v892 = vpop.f32.mrb[0].mxu0
    %v893 = vpop.f32.mrb[0].mxu0
    %894 = vdwg.mxu0
    %895 = vxpose.xlu0.c.b16.start [1/8] %v704, 128
    %896 = vxpose.xlu0.c.b16.cont [2/8] 0, 128
    %897 = vxpose.xlu0.c.b16.cont [3/8] 0, 128
    %898 = vxpose.xlu0.c.b16.cont [4/8] 0, 128
    %899 = vxpose.xlu0.c.b16.cont [5/8] 0, 128
    %900 = vxpose.xlu0.c.b16.cont [6/8] 0, 128
    %901 = vxpose.xlu0.c.b16.cont [7/8] 0, 128
    %902 = vxpose.xlu0.c.b16.end [8/8] 0, 128
    %v903 = vpop.trf.xlu0
    %v904 = vpop.trf.xlu0
    %v905 = vpop.trf.xlu0
    %v906 = vpop.trf.xlu0
    %v907 = vpop.trf.xlu0
    %v908 = vpop.trf.xlu0
    %v909 = vpop.trf.xlu0
    %v910 = vpop.trf.xlu0
    %v912 = vsel %vm180, %v903, 0
    %914 = vmatprep.subr.bf16.mxu0 0
    %915 = vmatpush1.bf16.msra.mxu0 %v794
    %916 = vmatprep.subr.bf16.mxu0 0
    %917 = vmatpush1.bf16.msra.mxu0 0
    %918 = vmatprep.subr.bf16.mxu0 0
    %919 = vmatpush1.bf16.msra.mxu0 0
    %920 = vmatprep.subr.bf16.mxu0 0
    %921 = vmatpush1.bf16.msra.mxu0 0
    %922 = vmatprep.subr.bf16.mxu0 0
    %923 = vmatpush1.bf16.msra.mxu0 0
    %924 = vmatprep.subr.bf16.mxu0 0
    %925 = vmatpush1.bf16.msra.mxu0 0
    %926 = vmatprep.subr.bf16.mxu0 0
    %927 = vmatpush1.bf16.msra.mxu0 0
    %928 = vmatprep.subr.bf16.mxu0 0
    %929 = vmatpush1.bf16.msra.mxu0 0
    %930 = vmatprep.subr.bf16.mxu0 0
    %931 = vmatpush1.bf16.msra.mxu0 0
    %932 = vmatprep.subr.bf16.mxu0 0
    %933 = vmatpush1.bf16.msra.mxu0 0
    %934 = vmatprep.subr.bf16.mxu0 0
    %935 = vmatpush1.bf16.msra.mxu0 0
    %936 = vmatprep.subr.bf16.mxu0 0
    %937 = vmatpush1.bf16.msra.mxu0 0
    %938 = vmatprep.subr.bf16.mxu0 0
    %939 = vmatpush1.bf16.msra.mxu0 0
    %940 = vmatprep.subr.bf16.mxu0 0
    %941 = vmatpush1.bf16.msra.mxu0 0
    %942 = vmatprep.subr.bf16.mxu0 0
    %943 = vmatpush1.bf16.msra.mxu0 0
    %944 = vmatprep.subr.bf16.mxu0 0
    %945 = vmatpush1.bf16.msra.mxu0 0
    %946 = vmatprep.mubr.bf16.mxu0 0
    %947 = vmatmul.mubr.bf16.gmra.mrb[0].mxu0 %v912
    %v948 = vpop.f32.mrb[0].mxu0
    %v949 = vadd.f32 %v51, %v948
    %v950 = vpop.f32.mrb[0].mxu0
    %v951 = vpop.f32.mrb[0].mxu0
    %v952 = vpop.f32.mrb[0].mxu0
    %953 = vdwg.mxu0
    %954 = vxpose.xlu0.c.b16.start [1/8] %v705, 128
    %955 = vxpose.xlu0.c.b16.cont [2/8] 0, 128
    %956 = vxpose.xlu0.c.b16.cont [3/8] 0, 128
    %957 = vxpose.xlu0.c.b16.cont [4/8] 0, 128
    %958 = vxpose.xlu0.c.b16.cont [5/8] 0, 128
    %959 = vxpose.xlu0.c.b16.cont [6/8] 0, 128
    %960 = vxpose.xlu0.c.b16.cont [7/8] 0, 128
    %961 = vxpose.xlu0.c.b16.end [8/8] 0, 128
    %v962 = vpop.trf.xlu0
    %v963 = vpop.trf.xlu0
    %v964 = vpop.trf.xlu0
    %v965 = vpop.trf.xlu0
    %v966 = vpop.trf.xlu0
    %v967 = vpop.trf.xlu0
    %v968 = vpop.trf.xlu0
    %v969 = vpop.trf.xlu0
    %v971 = vsel %vm180, %v962, 0
    %973 = vmatprep.subr.bf16.mxu0 0
    %974 = vmatpush1.bf16.msra.mxu0 %v732
    %975 = vmatprep.subr.bf16.mxu0 0
    %976 = vmatpush1.bf16.msra.mxu0 0
    %977 = vmatprep.subr.bf16.mxu0 0
    %978 = vmatpush1.bf16.msra.mxu0 0
    %979 = vmatprep.subr.bf16.mxu0 0
    %980 = vmatpush1.bf16.msra.mxu0 0
    %981 = vmatprep.subr.bf16.mxu0 0
    %982 = vmatpush1.bf16.msra.mxu0 0
    %983 = vmatprep.subr.bf16.mxu0 0
    %984 = vmatpush1.bf16.msra.mxu0 0
    %985 = vmatprep.subr.bf16.mxu0 0
    %986 = vmatpush1.bf16.msra.mxu0 0
    %987 = vmatprep.subr.bf16.mxu0 0
    %988 = vmatpush1.bf16.msra.mxu0 0
    %989 = vmatprep.subr.bf16.mxu0 0
    %990 = vmatpush1.bf16.msra.mxu0 0
    %991 = vmatprep.subr.bf16.mxu0 0
    %992 = vmatpush1.bf16.msra.mxu0 0
    %993 = vmatprep.subr.bf16.mxu0 0
    %994 = vmatpush1.bf16.msra.mxu0 0
    %995 = vmatprep.subr.bf16.mxu0 0
    %996 = vmatpush1.bf16.msra.mxu0 0
    %997 = vmatprep.subr.bf16.mxu0 0
    %998 = vmatpush1.bf16.msra.mxu0 0
    %999 = vmatprep.subr.bf16.mxu0 0
    %1000 = vmatpush1.bf16.msra.mxu0 0
    %1001 = vmatprep.subr.bf16.mxu0 0
    %1002 = vmatpush1.bf16.msra.mxu0 0
    %1003 = vmatprep.subr.bf16.mxu0 0
    %1004 = vmatpush1.bf16.msra.mxu0 0
    %1005 = vmatprep.mubr.bf16.mxu0 0
    %1006 = vmatmul.mubr.bf16.gmra.mrb[0].mxu0 %v971
    %v1007 = vpop.f32.mrb[0].mxu0
    %v1008 = vadd.f32 %v52, %v1007
    %v1009 = vpop.f32.mrb[0].mxu0
    %v1010 = vpop.f32.mrb[0].mxu0
    %v1011 = vpop.f32.mrb[0].mxu0
    %1012 = vdwg.mxu0
    %1013 = vxpose.xlu0.c.b16.start [1/8] %v706, 128
    %1014 = vxpose.xlu0.c.b16.cont [2/8] 0, 128
    %1015 = vxpose.xlu0.c.b16.cont [3/8] 0, 128
    %1016 = vxpose.xlu0.c.b16.cont [4/8] 0, 128
    %1017 = vxpose.xlu0.c.b16.cont [5/8] 0, 128
    %1018 = vxpose.xlu0.c.b16.cont [6/8] 0, 128
    %1019 = vxpose.xlu0.c.b16.cont [7/8] 0, 128
    %1020 = vxpose.xlu0.c.b16.end [8/8] 0, 128
    %v1021 = vpop.trf.xlu0
    %v1022 = vpop.trf.xlu0
    %v1023 = vpop.trf.xlu0
    %v1024 = vpop.trf.xlu0
    %v1025 = vpop.trf.xlu0
    %v1026 = vpop.trf.xlu0
    %v1027 = vpop.trf.xlu0
    %v1028 = vpop.trf.xlu0
    %v1030 = vsel %vm180, %v1021, 0
    %1032 = vmatprep.subr.bf16.mxu0 0
    %1033 = vmatpush1.bf16.msra.mxu0 %v794
    %1034 = vmatprep.subr.bf16.mxu0 0
    %1035 = vmatpush1.bf16.msra.mxu0 0
    %1036 = vmatprep.subr.bf16.mxu0 0
    %1037 = vmatpush1.bf16.msra.mxu0 0
    %1038 = vmatprep.subr.bf16.mxu0 0
    %1039 = vmatpush1.bf16.msra.mxu0 0
    %1040 = vmatprep.subr.bf16.mxu0 0
    %1041 = vmatpush1.bf16.msra.mxu0 0
    %1042 = vmatprep.subr.bf16.mxu0 0
    %1043 = vmatpush1.bf16.msra.mxu0 0
    %1044 = vmatprep.subr.bf16.mxu0 0
    %1045 = vmatpush1.bf16.msra.mxu0 0
    %1046 = vmatprep.subr.bf16.mxu0 0
    %1047 = vmatpush1.bf16.msra.mxu0 0
    %1048 = vmatprep.subr.bf16.mxu0 0
    %1049 = vmatpush1.bf16.msra.mxu0 0
    %1050 = vmatprep.subr.bf16.mxu0 0
    %1051 = vmatpush1.bf16.msra.mxu0 0
    %1052 = vmatprep.subr.bf16.mxu0 0
    %1053 = vmatpush1.bf16.msra.mxu0 0
    %1054 = vmatprep.subr.bf16.mxu0 0
    %1055 = vmatpush1.bf16.msra.mxu0 0
    %1056 = vmatprep.subr.bf16.mxu0 0
    %1057 = vmatpush1.bf16.msra.mxu0 0
    %1058 = vmatprep.subr.bf16.mxu0 0
    %1059 = vmatpush1.bf16.msra.mxu0 0
    %1060 = vmatprep.subr.bf16.mxu0 0
    %1061 = vmatpush1.bf16.msra.mxu0 0
    %1062 = vmatprep.subr.bf16.mxu0 0
    %1063 = vmatpush1.bf16.msra.mxu0 0
    %1064 = vmatprep.mubr.bf16.mxu0 0
    %1065 = vmatmul.mubr.bf16.gmra.mrb[0].mxu0 %v1030
    %v1066 = vpop.f32.mrb[0].mxu0
    %v1067 = vadd.f32 %v52, %v1066
    %v1068 = vpop.f32.mrb[0].mxu0
    %v1069 = vpop.f32.mrb[0].mxu0
    %v1070 = vpop.f32.mrb[0].mxu0
    %1071 = vdwg.mxu0
    %1072 = vxpose.xlu0.c.b16.start [1/8] %v707, 128
    %1073 = vxpose.xlu0.c.b16.cont [2/8] 0, 128
    %1074 = vxpose.xlu0.c.b16.cont [3/8] 0, 128
    %1075 = vxpose.xlu0.c.b16.cont [4/8] 0, 128
    %1076 = vxpose.xlu0.c.b16.cont [5/8] 0, 128
    %1077 = vxpose.xlu0.c.b16.cont [6/8] 0, 128
    %1078 = vxpose.xlu0.c.b16.cont [7/8] 0, 128
    %1079 = vxpose.xlu0.c.b16.end [8/8] 0, 128
    %v1080 = vpop.trf.xlu0
    %v1081 = vpop.trf.xlu0
    %v1082 = vpop.trf.xlu0
    %v1083 = vpop.trf.xlu0
    %v1084 = vpop.trf.xlu0
    %v1085 = vpop.trf.xlu0
    %v1086 = vpop.trf.xlu0
    %v1087 = vpop.trf.xlu0
    %v1089 = vsel %vm180, %v1080, 0
    %1091 = vmatprep.subr.bf16.mxu0 0
    %1092 = vmatpush1.bf16.msra.mxu0 %v732
    %1093 = vmatprep.subr.bf16.mxu0 0
    %1094 = vmatpush1.bf16.msra.mxu0 0
    %1095 = vmatprep.subr.bf16.mxu0 0
    %1096 = vmatpush1.bf16.msra.mxu0 0
    %1097 = vmatprep.subr.bf16.mxu0 0
    %1098 = vmatpush1.bf16.msra.mxu0 0
    %1099 = vmatprep.subr.bf16.mxu0 0
    %1100 = vmatpush1.bf16.msra.mxu0 0
    %1101 = vmatprep.subr.bf16.mxu0 0
    %1102 = vmatpush1.bf16.msra.mxu0 0
    %1103 = vmatprep.subr.bf16.mxu0 0
    %1104 = vmatpush1.bf16.msra.mxu0 0
    %1105 = vmatprep.subr.bf16.mxu0 0
    %1106 = vmatpush1.bf16.msra.mxu0 0
    %1107 = vmatprep.subr.bf16.mxu0 0
    %1108 = vmatpush1.bf16.msra.mxu0 0
    %1109 = vmatprep.subr.bf16.mxu0 0
    %1110 = vmatpush1.bf16.msra.mxu0 0
    %1111 = vmatprep.subr.bf16.mxu0 0
    %1112 = vmatpush1.bf16.msra.mxu0 0
    %1113 = vmatprep.subr.bf16.mxu0 0
    %1114 = vmatpush1.bf16.msra.mxu0 0
    %1115 = vmatprep.subr.bf16.mxu0 0
    %1116 = vmatpush1.bf16.msra.mxu0 0
    %1117 = vmatprep.subr.bf16.mxu0 0
    %1118 = vmatpush1.bf16.msra.mxu0 0
    %1119 = vmatprep.subr.bf16.mxu0 0
    %1120 = vmatpush1.bf16.msra.mxu0 0
    %1121 = vmatprep.subr.bf16.mxu0 0
    %1122 = vmatpush1.bf16.msra.mxu0 0
    %1123 = vmatprep.mubr.bf16.mxu0 0
    %1124 = vmatmul.mubr.bf16.gmra.mrb[0].mxu0 %v1089
    %v1125 = vpop.f32.mrb[0].mxu0
    %v1126 = vadd.f32 %v53, %v1125
    %v1127 = vpop.f32.mrb[0].mxu0
    %v1128 = vpop.f32.mrb[0].mxu0
    %v1129 = vpop.f32.mrb[0].mxu0
    %1130 = vdwg.mxu0
    %1131 = vxpose.xlu0.c.b16.start [1/8] %v708, 128
    %1132 = vxpose.xlu0.c.b16.cont [2/8] 0, 128
    %1133 = vxpose.xlu0.c.b16.cont [3/8] 0, 128
    %1134 = vxpose.xlu0.c.b16.cont [4/8] 0, 128
    %1135 = vxpose.xlu0.c.b16.cont [5/8] 0, 128
    %1136 = vxpose.xlu0.c.b16.cont [6/8] 0, 128
    %1137 = vxpose.xlu0.c.b16.cont [7/8] 0, 128
    %1138 = vxpose.xlu0.c.b16.end [8/8] 0, 128
    %v1139 = vpop.trf.xlu0
    %v1140 = vpop.trf.xlu0
    %v1141 = vpop.trf.xlu0
    %v1142 = vpop.trf.xlu0
    %v1143 = vpop.trf.xlu0
    %v1144 = vpop.trf.xlu0
    %v1145 = vpop.trf.xlu0
    %v1146 = vpop.trf.xlu0
    %v1148 = vsel %vm180, %v1139, 0
    %1150 = vmatprep.subr.bf16.mxu0 0
    %1151 = vmatpush1.bf16.msra.mxu0 %v794
    %1152 = vmatprep.subr.bf16.mxu0 0
    %1153 = vmatpush1.bf16.msra.mxu0 0
    %1154 = vmatprep.subr.bf16.mxu0 0
    %1155 = vmatpush1.bf16.msra.mxu0 0
    %1156 = vmatprep.subr.bf16.mxu0 0
    %1157 = vmatpush1.bf16.msra.mxu0 0
    %1158 = vmatprep.subr.bf16.mxu0 0
    %1159 = vmatpush1.bf16.msra.mxu0 0
    %1160 = vmatprep.subr.bf16.mxu0 0
    %1161 = vmatpush1.bf16.msra.mxu0 0
    %1162 = vmatprep.subr.bf16.mxu0 0
    %1163 = vmatpush1.bf16.msra.mxu0 0
    %1164 = vmatprep.subr.bf16.mxu0 0
    %1165 = vmatpush1.bf16.msra.mxu0 0
    %1166 = vmatprep.subr.bf16.mxu0 0
    %1167 = vmatpush1.bf16.msra.mxu0 0
    %1168 = vmatprep.subr.bf16.mxu0 0
    %1169 = vmatpush1.bf16.msra.mxu0 0
    %1170 = vmatprep.subr.bf16.mxu0 0
    %1171 = vmatpush1.bf16.msra.mxu0 0
    %1172 = vmatprep.subr.bf16.mxu0 0
    %1173 = vmatpush1.bf16.msra.mxu0 0
    %1174 = vmatprep.subr.bf16.mxu0 0
    %1175 = vmatpush1.bf16.msra.mxu0 0
    %1176 = vmatprep.subr.bf16.mxu0 0
    %1177 = vmatpush1.bf16.msra.mxu0 0
    %1178 = vmatprep.subr.bf16.mxu0 0
    %1179 = vmatpush1.bf16.msra.mxu0 0
    %1180 = vmatprep.subr.bf16.mxu0 0
    %1181 = vmatpush1.bf16.msra.mxu0 0
    %1182 = vmatprep.mubr.bf16.mxu0 0
    %1183 = vmatmul.mubr.bf16.gmra.mrb[0].mxu0 %v1148
    %v1184 = vpop.f32.mrb[0].mxu0
    %v1185 = vadd.f32 %v53, %v1184
    %v1186 = vpop.f32.mrb[0].mxu0
    %v1187 = vpop.f32.mrb[0].mxu0
    %v1188 = vpop.f32.mrb[0].mxu0
    %1189 = vdwg.mxu0
    %v1190 = vld [vmem:[%s5] sm:$0xff]
    %v1191 = vsel %vm103, %v769, 0.0
    %1192 = vadd.xlane.f32.xlu0 %v1191
    %v1193 = vpop.xlane.xlu0 %1192
    %v1194 = vsel %vm103, %v831, 0.0
    %1195 = vadd.xlane.f32.xlu0 %v1194
    %v1196 = vpop.xlane.xlu0 %1195
    %v1197 = vsel %vm103, %v890, 0.0
    %1198 = vadd.xlane.f32.xlu0 %v1197
    %v1199 = vpop.xlane.xlu0 %1198
    %v1200 = vsel %vm103, %v949, 0.0
    %1201 = vadd.xlane.f32.xlu0 %v1200
    %v1202 = vpop.xlane.xlu0 %1201
    %v1203 = vsel %vm103, %v1008, 0.0
    %1204 = vadd.xlane.f32.xlu0 %v1203
    %v1205 = vpop.xlane.xlu0 %1204
    %v1206 = vsel %vm103, %v1067, 0.0
    %1207 = vadd.xlane.f32.xlu0 %v1206
    %v1208 = vpop.xlane.xlu0 %1207
    %v1209 = vsel %vm103, %v1126, 0.0
    %1210 = vadd.xlane.f32.xlu0 %v1209
    %v1211 = vpop.xlane.xlu0 %1210
    %v1212 = vsel %vm103, %v1185, 0.0
    %1213 = vadd.xlane.f32.xlu0 %v1212
    %v1214 = vpop.xlane.xlu0 %1213
    %v1215 = vrcp.pop 32.0
    %v1216 = vmul.f32 %v1193, %v1215
    %v1217 = vmul.f32 %v1196, %v1215
    %v1218 = vmul.f32 %v1199, %v1215
    %v1219 = vmul.f32 %v1202, %v1215
    %v1220 = vmul.f32 %v1205, %v1215
    %v1221 = vmul.f32 %v1208, %v1215
    %v1222 = vmul.f32 %v1211, %v1215
    %v1223 = vmul.f32 %v1214, %v1215
    %v1224 = vsub.f32 %v769, %v1216
    %v1225 = vsub.f32 %v831, %v1217
    %v1226 = vsub.f32 %v890, %v1218
    %v1227 = vsub.f32 %v949, %v1219
    %v1228 = vsub.f32 %v1008, %v1220
    %v1229 = vsub.f32 %v1067, %v1221
    %v1230 = vsub.f32 %v1126, %v1222
    %v1231 = vsub.f32 %v1185, %v1223
    %v1232 = vmul.f32 %v1224, %v1224
    %v1233 = vmul.f32 %v1225, %v1225
    %v1234 = vmul.f32 %v1226, %v1226
    %v1235 = vmul.f32 %v1227, %v1227
    %v1236 = vmul.f32 %v1228, %v1228
    %v1237 = vmul.f32 %v1229, %v1229
    %v1238 = vmul.f32 %v1230, %v1230
    %v1239 = vmul.f32 %v1231, %v1231
    %v1240 = vsel %vm103, %v1232, 0.0
    %1241 = vadd.xlane.f32.xlu0 %v1240
    %v1242 = vpop.xlane.xlu0 %1241
    %v1243 = vsel %vm103, %v1233, 0.0
    %1244 = vadd.xlane.f32.xlu0 %v1243
    %v1245 = vpop.xlane.xlu0 %1244
    %v1246 = vsel %vm103, %v1234, 0.0
    %1247 = vadd.xlane.f32.xlu0 %v1246
    %v1248 = vpop.xlane.xlu0 %1247
    %v1249 = vsel %vm103, %v1235, 0.0
    %1250 = vadd.xlane.f32.xlu0 %v1249
    %v1251 = vpop.xlane.xlu0 %1250
    %v1252 = vsel %vm103, %v1236, 0.0
    %1253 = vadd.xlane.f32.xlu0 %v1252
    %v1254 = vpop.xlane.xlu0 %1253
    %v1255 = vsel %vm103, %v1237, 0.0
    %1256 = vadd.xlane.f32.xlu0 %v1255
    %v1257 = vpop.xlane.xlu0 %1256
    %v1258 = vsel %vm103, %v1238, 0.0
    %1259 = vadd.xlane.f32.xlu0 %v1258
    %v1260 = vpop.xlane.xlu0 %1259
    %v1261 = vsel %vm103, %v1239, 0.0
    %1262 = vadd.xlane.f32.xlu0 %v1261
    %v1263 = vpop.xlane.xlu0 %1262
    %v1264 = vmul.f32 %v1242, %v1215
    %v1265 = vmul.f32 %v1245, %v1215
    %v1266 = vmul.f32 %v1248, %v1215
    %v1267 = vmul.f32 %v1251, %v1215
    %v1268 = vmul.f32 %v1254, %v1215
    %v1269 = vmul.f32 %v1257, %v1215
    %v1270 = vmul.f32 %v1260, %v1215
    %v1271 = vmul.f32 %v1263, %v1215
    %v1272 = vadd.f32 %v1264, 1e-05
    %v1273 = vadd.f32 %v1265, 1e-05
    %v1274 = vadd.f32 %v1266, 1e-05
    %v1275 = vadd.f32 %v1267, 1e-05
    %v1276 = vadd.f32 %v1268, 1e-05
    %v1277 = vadd.f32 %v1269, 1e-05
    %v1278 = vadd.f32 %v1270, 1e-05
    %v1279 = vadd.f32 %v1271, 1e-05
    %v1280 = vrsqrt.pop %v1272
    %v1281 = vrsqrt.pop %v1273
    %v1282 = vrsqrt.pop %v1274
    %v1283 = vrsqrt.pop %v1275
    %v1284 = vrsqrt.pop %v1276
    %v1285 = vrsqrt.pop %v1277
    %v1286 = vrsqrt.pop %v1278
    %v1287 = vrsqrt.pop %v1279
    %v1288 = vmul.f32 %v1224, %v1280
    %v1289 = vmul.f32 %v1225, %v1281
    %v1290 = vmul.f32 %v1226, %v1282
    %v1291 = vmul.f32 %v1227, %v1283
    %v1292 = vmul.f32 %v1228, %v1284
    %v1293 = vmul.f32 %v1229, %v1285
    %v1294 = vmul.f32 %v1230, %v1286
    %v1295 = vmul.f32 %v1231, %v1287
    %v1296 = vlaneseq
    %v1297 = vshrl.u32 %v1296, 7
    %v1298 = vsub.s32 0, %v1297
    %v1299 = vrot.slane %v1190, %v1298
    %v1300 = vmul.f32 %v1288, %v1299
    %v1301 = vmul.f32 %v1289, %v1299
    %v1302 = vmul.f32 %v1290, %v1299
    %v1303 = vmul.f32 %v1291, %v1299
    %v1304 = vmul.f32 %v1292, %v1299
    %v1305 = vmul.f32 %v1293, %v1299
    %v1306 = vmul.f32 %v1294, %v1299
    %v1307 = vmul.f32 %v1295, %v1299
    %v1308 = vlaneseq
    %v1309 = vshrl.u32 %v1308, 7
    %v1310 = vsub.s32 1, %v1309
    %v1311 = vrot.slane %v1190, %v1310
    %v1312 = vadd.f32 %v1300, %v1311
    %v1313 = vadd.f32 %v1301, %v1311
    %v1314 = vadd.f32 %v1302, %v1311
    %v1315 = vadd.f32 %v1303, %v1311
    %v1316 = vadd.f32 %v1304, %v1311
    %v1317 = vadd.f32 %v1305, %v1311
    %v1318 = vadd.f32 %v1306, %v1311
    %v1319 = vadd.f32 %v1307, %v1311
    %v1320 = vlaneseq
    %v1321 = vshrl.u32 %v1320, 7
    %v1322 = vsub.s32 2, %v1321
    %v1323 = vrot.slane %v1190, %v1322
    %v1324 = vmul.f32 %v1312, %v1323
    %v1325 = vmul.f32 %v1313, %v1323
    %v1326 = vmul.f32 %v1314, %v1323
    %v1327 = vmul.f32 %v1315, %v1323
    %v1328 = vmul.f32 %v1316, %v1323
    %v1329 = vmul.f32 %v1317, %v1323
    %v1330 = vmul.f32 %v1318, %v1323
    %v1331 = vmul.f32 %v1319, %v1323
    %v1332 = vsel %vm103, %v1324, 0.0
    %1333 = vadd.xlane.f32.xlu0 %v1332
    %v1334 = vpop.xlane.xlu0 %1333
    %v1335 = vsel %vm103, %v1325, 0.0
    %1336 = vadd.xlane.f32.xlu0 %v1335
    %v1337 = vpop.xlane.xlu0 %1336
    %v1338 = vsel %vm103, %v1326, 0.0
    %1339 = vadd.xlane.f32.xlu0 %v1338
    %v1340 = vpop.xlane.xlu0 %1339
    %v1341 = vsel %vm103, %v1327, 0.0
    %1342 = vadd.xlane.f32.xlu0 %v1341
    %v1343 = vpop.xlane.xlu0 %1342
    %v1344 = vsel %vm103, %v1328, 0.0
    %1345 = vadd.xlane.f32.xlu0 %v1344
    %v1346 = vpop.xlane.xlu0 %1345
    %v1347 = vsel %vm103, %v1329, 0.0
    %1348 = vadd.xlane.f32.xlu0 %v1347
    %v1349 = vpop.xlane.xlu0 %1348
    %v1350 = vsel %vm103, %v1330, 0.0
    %1351 = vadd.xlane.f32.xlu0 %v1350
    %v1352 = vpop.xlane.xlu0 %1351
    %v1353 = vsel %vm103, %v1331, 0.0
    %1354 = vadd.xlane.f32.xlu0 %v1353
    %v1355 = vpop.xlane.xlu0 %1354
    %v1364 = vlaneseq
    %v1365 = vand.u32 %v1364, 127
    %v1366 = vlaneseq
    %v1367 = vshrl.u32 %v1366, 7
    %v1368 = vsub.s32 %v1365, %v1367
    %v1369 = vrot.slane %v1334, %v1368
    %v1370 = vlaneseq
    %v1371 = vshrl.u32 %v1370, 7
    %v1372 = vsub.s32 %v1365, %v1371
    %v1373 = vrot.slane %v1337, %v1372
    %v1374 = vlaneseq
    %v1375 = vshrl.u32 %v1374, 7
    %v1376 = vsub.s32 %v1365, %v1375
    %v1377 = vrot.slane %v1340, %v1376
    %v1378 = vlaneseq
    %v1379 = vshrl.u32 %v1378, 7
    %v1380 = vsub.s32 %v1365, %v1379
    %v1381 = vrot.slane %v1343, %v1380
    %v1382 = vlaneseq
    %v1383 = vshrl.u32 %v1382, 7
    %v1384 = vsub.s32 %v1365, %v1383
    %v1385 = vrot.slane %v1346, %v1384
    %v1386 = vlaneseq
    %v1387 = vshrl.u32 %v1386, 7
    %v1388 = vsub.s32 %v1365, %v1387
    %v1389 = vrot.slane %v1349, %v1388
    %v1390 = vlaneseq
    %v1391 = vshrl.u32 %v1390, 7
    %v1392 = vsub.s32 %v1365, %v1391
    %v1393 = vrot.slane %v1352, %v1392
    %v1394 = vlaneseq
    %v1395 = vshrl.u32 %v1394, 7
    %v1396 = vsub.s32 %v1365, %v1395
    %v1397 = vrot.slane %v1355, %v1396
    %vm1398 = vcmask 1041409
    %v1399 = vsel %vm1398, %v1373, %v1369
    %v1400 = vsel %vm1398, %v1381, %v1377
    %v1401 = vsel %vm1398, %v1389, %v1385
    %v1402 = vsel %vm1398, %v1397, %v1393
    %vm1407 = vcmask 58368
    %v1408 = vsel %vm1407, %v1399, -inf
    %1409 = vmax.xlane.f32.xlu0 %v1408
    %v1410 = vpop.xlane.xlu0 %1409
    %v1411 = vsel %vm1407, %v1400, -inf
    %1412 = vmax.xlane.f32.xlu0 %v1411
    %v1413 = vpop.xlane.xlu0 %1412
    %v1414 = vsel %vm1407, %v1401, -inf
    %1415 = vmax.xlane.f32.xlu0 %v1414
    %v1416 = vpop.xlane.xlu0 %1415
    %v1417 = vsel %vm1407, %v1402, -inf
    %1418 = vmax.xlane.f32.xlu0 %v1417
    %v1419 = vpop.xlane.xlu0 %1418
    %v1424 = vlaneseq
    %v1425 = vshrl.u32 %v1424, 7
    %v1426 = vsub.s32 0, %v1425
    %v1427 = vrot.slane %v1410, %v1426
    %v1428 = vlaneseq
    %v1429 = vshrl.u32 %v1428, 7
    %v1430 = vsub.s32 1, %v1429
    %v1431 = vrot.slane %v1410, %v1430
    %v1432 = vlaneseq
    %v1433 = vshrl.u32 %v1432, 7
    %v1434 = vsub.s32 0, %v1433
    %v1435 = vrot.slane %v1413, %v1434
    %v1436 = vlaneseq
    %v1437 = vshrl.u32 %v1436, 7
    %v1438 = vsub.s32 1, %v1437
    %v1439 = vrot.slane %v1413, %v1438
    %v1440 = vlaneseq
    %v1441 = vshrl.u32 %v1440, 7
    %v1442 = vsub.s32 0, %v1441
    %v1443 = vrot.slane %v1416, %v1442
    %v1444 = vlaneseq
    %v1445 = vshrl.u32 %v1444, 7
    %v1446 = vsub.s32 1, %v1445
    %v1447 = vrot.slane %v1416, %v1446
    %v1448 = vlaneseq
    %v1449 = vshrl.u32 %v1448, 7
    %v1450 = vsub.s32 0, %v1449
    %v1451 = vrot.slane %v1419, %v1450
    %v1452 = vlaneseq
    %v1453 = vshrl.u32 %v1452, 7
    %v1454 = vsub.s32 1, %v1453
    %v1455 = vrot.slane %v1419, %v1454
    %v1464 = vsub.f32 %v1334, %v1427
    %v1465 = vsub.f32 %v1337, %v1431
    %v1466 = vsub.f32 %v1340, %v1435
    %v1467 = vsub.f32 %v1343, %v1439
    %v1468 = vsub.f32 %v1346, %v1443
    %v1469 = vsub.f32 %v1349, %v1447
    %v1470 = vsub.f32 %v1352, %v1451
    %v1471 = vsub.f32 %v1355, %v1455
    %v1472 = vmul.f32 %v1464, 1.442695
    %v1473 = vpow.pop %v1472
    %v1474 = vmul.f32 %v1465, 1.442695
    %v1475 = vpow.pop %v1474
    %v1476 = vmul.f32 %v1466, 1.442695
    %v1477 = vpow.pop %v1476
    %v1478 = vmul.f32 %v1467, 1.442695
    %v1479 = vpow.pop %v1478
    %v1480 = vmul.f32 %v1468, 1.442695
    %v1481 = vpow.pop %v1480
    %v1482 = vmul.f32 %v1469, 1.442695
    %v1483 = vpow.pop %v1482
    %v1484 = vmul.f32 %v1470, 1.442695
    %v1485 = vpow.pop %v1484
    %v1486 = vmul.f32 %v1471, 1.442695
    %v1487 = vpow.pop %v1486
    %1496 = vset.pattern.permute.xlu0 0
    %1497 = vperm.xlu0 %1496, %v1473
    %v1498 = vpop.permute.xlu0 %1497
    %1499 = vset.pattern.permute.xlu0 0
    %1500 = vperm.xlu0 %1499, %v1475
    %v1501 = vpop.permute.xlu0 %1500
    %1502 = vset.pattern.permute.xlu0 0
    %1503 = vperm.xlu0 %1502, %v1477
    %v1504 = vpop.permute.xlu0 %1503
    %1505 = vset.pattern.permute.xlu0 0
    %1506 = vperm.xlu0 %1505, %v1479
    %v1507 = vpop.permute.xlu0 %1506
    %1508 = vset.pattern.permute.xlu0 0
    %1509 = vperm.xlu0 %1508, %v1481
    %v1510 = vpop.permute.xlu0 %1509
    %1511 = vset.pattern.permute.xlu0 0
    %1512 = vperm.xlu0 %1511, %v1483
    %v1513 = vpop.permute.xlu0 %1512
    %1514 = vset.pattern.permute.xlu0 0
    %1515 = vperm.xlu0 %1514, %v1485
    %v1516 = vpop.permute.xlu0 %1515
    %1517 = vset.pattern.permute.xlu0 0
    %1518 = vperm.xlu0 %1517, %v1487
    %v1519 = vpop.permute.xlu0 %1518
    %v1520 = vlaneseq
    %v1521 = vshrl.u32 %v1520, 7
    %v1522 = vsub.s32 %v1365, %v1521
    %v1523 = vrot.slane %v1498, %v1522
    %v1524 = vlaneseq
    %v1525 = vshrl.u32 %v1524, 7
    %v1526 = vsub.s32 %v1365, %v1525
    %v1527 = vrot.slane %v1501, %v1526
    %v1528 = vlaneseq
    %v1529 = vshrl.u32 %v1528, 7
    %v1530 = vsub.s32 %v1365, %v1529
    %v1531 = vrot.slane %v1504, %v1530
    %v1532 = vlaneseq
    %v1533 = vshrl.u32 %v1532, 7
    %v1534 = vsub.s32 %v1365, %v1533
    %v1535 = vrot.slane %v1507, %v1534
    %v1536 = vlaneseq
    %v1537 = vshrl.u32 %v1536, 7
    %v1538 = vsub.s32 %v1365, %v1537
    %v1539 = vrot.slane %v1510, %v1538
    %v1540 = vlaneseq
    %v1541 = vshrl.u32 %v1540, 7
    %v1542 = vsub.s32 %v1365, %v1541
    %v1543 = vrot.slane %v1513, %v1542
    %v1544 = vlaneseq
    %v1545 = vshrl.u32 %v1544, 7
    %v1546 = vsub.s32 %v1365, %v1545
    %v1547 = vrot.slane %v1516, %v1546
    %v1548 = vlaneseq
    %v1549 = vshrl.u32 %v1548, 7
    %v1550 = vsub.s32 %v1365, %v1549
    %v1551 = vrot.slane %v1519, %v1550
    %v1552 = vsel %vm1398, %v1527, %v1523
    %v1553 = vsel %vm1398, %v1535, %v1531
    %v1554 = vsel %vm1398, %v1543, %v1539
    %v1555 = vsel %vm1398, %v1551, %v1547
    %v1560 = vsel %vm1407, %v1552, 0.0
    %1561 = vadd.xlane.f32.xlu0 %v1560
    %v1562 = vpop.xlane.xlu0 %1561
    %v1563 = vsel %vm1407, %v1553, 0.0
    %1564 = vadd.xlane.f32.xlu0 %v1563
    %v1565 = vpop.xlane.xlu0 %1564
    %v1566 = vsel %vm1407, %v1554, 0.0
    %1567 = vadd.xlane.f32.xlu0 %v1566
    %v1568 = vpop.xlane.xlu0 %1567
    %v1569 = vsel %vm1407, %v1555, 0.0
    %1570 = vadd.xlane.f32.xlu0 %v1569
    %v1571 = vpop.xlane.xlu0 %1570
    %v1572 = vrcp.pop %v1562
    %v1573 = vrcp.pop %v1565
    %v1574 = vrcp.pop %v1568
    %v1575 = vrcp.pop %v1571
    %v1580 = vlaneseq
    %v1581 = vshrl.u32 %v1580, 7
    %v1582 = vsub.s32 0, %v1581
    %v1583 = vrot.slane %v1572, %v1582
    %v1584 = vlaneseq
    %v1585 = vshrl.u32 %v1584, 7
    %v1586 = vsub.s32 1, %v1585
    %v1587 = vrot.slane %v1572, %v1586
    %v1588 = vlaneseq
    %v1589 = vshrl.u32 %v1588, 7
    %v1590 = vsub.s32 0, %v1589
    %v1591 = vrot.slane %v1573, %v1590
    %v1592 = vlaneseq
    %v1593 = vshrl.u32 %v1592, 7
    %v1594 = vsub.s32 1, %v1593
    %v1595 = vrot.slane %v1573, %v1594
    %v1596 = vlaneseq
    %v1597 = vshrl.u32 %v1596, 7
    %v1598 = vsub.s32 0, %v1597
    %v1599 = vrot.slane %v1574, %v1598
    %v1600 = vlaneseq
    %v1601 = vshrl.u32 %v1600, 7
    %v1602 = vsub.s32 1, %v1601
    %v1603 = vrot.slane %v1574, %v1602
    %v1604 = vlaneseq
    %v1605 = vshrl.u32 %v1604, 7
    %v1606 = vsub.s32 0, %v1605
    %v1607 = vrot.slane %v1575, %v1606
    %v1608 = vlaneseq
    %v1609 = vshrl.u32 %v1608, 7
    %v1610 = vsub.s32 1, %v1609
    %v1611 = vrot.slane %v1575, %v1610
    %v1620 = vmul.f32 %v1473, %v1583
    %v1621 = vmul.f32 %v1475, %v1587
    %v1622 = vmul.f32 %v1477, %v1591
    %v1623 = vmul.f32 %v1479, %v1595
    %v1624 = vmul.f32 %v1481, %v1599
    %v1625 = vmul.f32 %v1483, %v1603
    %v1626 = vmul.f32 %v1485, %v1607
    %v1627 = vmul.f32 %v1487, %v1611
    %1629 = vset.pattern.permute.xlu0 0
    %1630 = vperm.xlu0 %1629, %v1620
    %v1631 = vpop.permute.xlu0 %1630
    %1634 = vset.pattern.permute.xlu0 0
    %1635 = vperm.xlu0 %1634, %v1621
    %v1636 = vpop.permute.xlu0 %1635
    %1639 = vset.pattern.permute.xlu0 0
    %1640 = vperm.xlu0 %1639, %v1622
    %v1641 = vpop.permute.xlu0 %1640
    %1644 = vset.pattern.permute.xlu0 0
    %1645 = vperm.xlu0 %1644, %v1623
    %v1646 = vpop.permute.xlu0 %1645
    %1649 = vset.pattern.permute.xlu0 0
    %1650 = vperm.xlu0 %1649, %v1624
    %v1651 = vpop.permute.xlu0 %1650
    %1654 = vset.pattern.permute.xlu0 0
    %1655 = vperm.xlu0 %1654, %v1625
    %v1656 = vpop.permute.xlu0 %1655
    %1659 = vset.pattern.permute.xlu0 0
    %1660 = vperm.xlu0 %1659, %v1626
    %v1661 = vpop.permute.xlu0 %1660
    %1664 = vset.pattern.permute.xlu0 0
    %1665 = vperm.xlu0 %1664, %v1627
    %v1666 = vpop.permute.xlu0 %1665
    %v1668 = vmul.f32 %v1312, %v1631
    %v1669 = vmul.f32 %v1313, %v1636
    %v1670 = vmul.f32 %v1314, %v1641
    %v1671 = vmul.f32 %v1315, %v1646
    %v1672 = vmul.f32 %v1316, %v1651
    %v1673 = vmul.f32 %v1317, %v1656
    %v1674 = vmul.f32 %v1318, %v1661
    %v1675 = vmul.f32 %v1319, %v1666
    %v1676 = vsel %vm103, %v1668, 0.0
    %v1677 = vrot.slane %v1676, 4
    %v1678 = vadd.f32 %v1676, %v1677
    %v1679 = vrot.slane %v1678, 2
    %v1680 = vadd.f32 %v1678, %v1679
    %v1681 = vrot.slane %v1680, 1
    %v1682 = vadd.f32 %v1680, %v1681
    %v1683 = vsel %vm103, %v1669, 0.0
    %v1684 = vrot.slane %v1683, 4
    %v1685 = vadd.f32 %v1683, %v1684
    %v1686 = vrot.slane %v1685, 2
    %v1687 = vadd.f32 %v1685, %v1686
    %v1688 = vrot.slane %v1687, 1
    %v1689 = vadd.f32 %v1687, %v1688
    %v1690 = vsel %vm103, %v1670, 0.0
    %v1691 = vrot.slane %v1690, 4
    %v1692 = vadd.f32 %v1690, %v1691
    %v1693 = vrot.slane %v1692, 2
    %v1694 = vadd.f32 %v1692, %v1693
    %v1695 = vrot.slane %v1694, 1
    %v1696 = vadd.f32 %v1694, %v1695
    %v1697 = vsel %vm103, %v1671, 0.0
    %v1698 = vrot.slane %v1697, 4
    %v1699 = vadd.f32 %v1697, %v1698
    %v1700 = vrot.slane %v1699, 2
    %v1701 = vadd.f32 %v1699, %v1700
    %v1702 = vrot.slane %v1701, 1
    %v1703 = vadd.f32 %v1701, %v1702
    %v1704 = vsel %vm103, %v1672, 0.0
    %v1705 = vrot.slane %v1704, 4
    %v1706 = vadd.f32 %v1704, %v1705
    %v1707 = vrot.slane %v1706, 2
    %v1708 = vadd.f32 %v1706, %v1707
    %v1709 = vrot.slane %v1708, 1
    %v1710 = vadd.f32 %v1708, %v1709
    %v1711 = vsel %vm103, %v1673, 0.0
    %v1712 = vrot.slane %v1711, 4
    %v1713 = vadd.f32 %v1711, %v1712
    %v1714 = vrot.slane %v1713, 2
    %v1715 = vadd.f32 %v1713, %v1714
    %v1716 = vrot.slane %v1715, 1
    %v1717 = vadd.f32 %v1715, %v1716
    %v1718 = vsel %vm103, %v1674, 0.0
    %v1719 = vrot.slane %v1718, 4
    %v1720 = vadd.f32 %v1718, %v1719
    %v1721 = vrot.slane %v1720, 2
    %v1722 = vadd.f32 %v1720, %v1721
    %v1723 = vrot.slane %v1722, 1
    %v1724 = vadd.f32 %v1722, %v1723
    %v1725 = vsel %vm103, %v1675, 0.0
    %v1726 = vrot.slane %v1725, 4
    %v1727 = vadd.f32 %v1725, %v1726
    %v1728 = vrot.slane %v1727, 2
    %v1729 = vadd.f32 %v1727, %v1728
    %v1730 = vrot.slane %v1729, 1
    %v1731 = vadd.f32 %v1729, %v1730
    %v1740 = vsel %vm1398, %v1689, %v1682
    %v1741 = vsel %vm1398, %v1703, %v1696
    %v1742 = vsel %vm1398, %v1717, %v1710
    %v1743 = vsel %vm1398, %v1731, %v1724
    %vm1748 = vcmask 254976
    %v1749 = vsel %vm1748, %v1740, 0.0
    %1750 = vadd.xlane.f32.xlu0 %v1749
    %v1751 = vpop.xlane.xlu0 %1750
    %v1752 = vsel %vm1748, %v1741, 0.0
    %1753 = vadd.xlane.f32.xlu0 %v1752
    %v1754 = vpop.xlane.xlu0 %1753
    %v1755 = vsel %vm1748, %v1742, 0.0
    %1756 = vadd.xlane.f32.xlu0 %v1755
    %v1757 = vpop.xlane.xlu0 %1756
    %v1758 = vsel %vm1748, %v1743, 0.0
    %1759 = vadd.xlane.f32.xlu0 %v1758
    %v1760 = vpop.xlane.xlu0 %1759
    %v1761 = vmul.f32 %v1751, %v1215
    %v1762 = vmul.f32 %v1754, %v1215
    %v1763 = vmul.f32 %v1757, %v1215
    %v1764 = vmul.f32 %v1760, %v1215
    %v1769 = vrot.slane %v1761, 1
    %v1770 = vrot.slane %v1762, 1
    %v1771 = vrot.slane %v1763, 1
    %v1772 = vrot.slane %v1764, 1
    %v1781 = vsub.f32 %v1682, %v1761
    %v1782 = vsub.f32 %v1689, %v1769
    %v1783 = vsub.f32 %v1696, %v1762
    %v1784 = vsub.f32 %v1703, %v1770
    %v1785 = vsub.f32 %v1710, %v1763
    %v1786 = vsub.f32 %v1717, %v1771
    %v1787 = vsub.f32 %v1724, %v1764
    %v1788 = vsub.f32 %v1731, %v1772
    %v1789 = vmul.f32 %v1781, %v1781
    %v1790 = vmul.f32 %v1782, %v1782
    %v1791 = vmul.f32 %v1783, %v1783
    %v1792 = vmul.f32 %v1784, %v1784
    %v1793 = vmul.f32 %v1785, %v1785
    %v1794 = vmul.f32 %v1786, %v1786
    %v1795 = vmul.f32 %v1787, %v1787
    %v1796 = vmul.f32 %v1788, %v1788
    %v1805 = vrot.slane %v1790, 7
    %v1806 = vsel %vm1398, %v1805, %v1789
    %v1807 = vrot.slane %v1792, 7
    %v1808 = vsel %vm1398, %v1807, %v1791
    %v1809 = vrot.slane %v1794, 7
    %v1810 = vsel %vm1398, %v1809, %v1793
    %v1811 = vrot.slane %v1796, 7
    %v1812 = vsel %vm1398, %v1811, %v1795
    %v1817 = vsel %vm1748, %v1806, 0.0
    %1818 = vadd.xlane.f32.xlu0 %v1817
    %v1819 = vpop.xlane.xlu0 %1818
    %v1820 = vsel %vm1748, %v1808, 0.0
    %1821 = vadd.xlane.f32.xlu0 %v1820
    %v1822 = vpop.xlane.xlu0 %1821
    %v1823 = vsel %vm1748, %v1810, 0.0
    %1824 = vadd.xlane.f32.xlu0 %v1823
    %v1825 = vpop.xlane.xlu0 %1824
    %v1826 = vsel %vm1748, %v1812, 0.0
    %1827 = vadd.xlane.f32.xlu0 %v1826
    %v1828 = vpop.xlane.xlu0 %1827
    %v1829 = vmul.f32 %v1819, %v1215
    %v1830 = vmul.f32 %v1822, %v1215
    %v1831 = vmul.f32 %v1825, %v1215
    %v1832 = vmul.f32 %v1828, %v1215
    %v1833 = vadd.f32 %v1829, 1e-05
    %v1834 = vadd.f32 %v1830, 1e-05
    %v1835 = vadd.f32 %v1831, 1e-05
    %v1836 = vadd.f32 %v1832, 1e-05
    %v1837 = vrsqrt.pop %v1833
    %v1838 = vrsqrt.pop %v1834
    %v1839 = vrsqrt.pop %v1835
    %v1840 = vrsqrt.pop %v1836
    %v1845 = vrot.slane %v1837, 1
    %v1846 = vrot.slane %v1838, 1
    %v1847 = vrot.slane %v1839, 1
    %v1848 = vrot.slane %v1840, 1
    %v1857 = vmul.f32 %v1781, %v1837
    %v1858 = vmul.f32 %v1782, %v1845
    %v1859 = vmul.f32 %v1783, %v1838
    %v1860 = vmul.f32 %v1784, %v1846
    %v1861 = vmul.f32 %v1785, %v1839
    %v1862 = vmul.f32 %v1786, %v1847
    %v1863 = vmul.f32 %v1787, %v1840
    %v1864 = vmul.f32 %v1788, %v1848
    %v1865 = vlaneseq
    %v1866 = vshrl.u32 %v1865, 7
    %v1867 = vsub.s32 3, %v1866
    %v1868 = vrot.slane %v1190, %v1867
    %v1869 = vmul.f32 %v1857, %v1868
    %v1870 = vmul.f32 %v1858, %v1868
    %v1871 = vmul.f32 %v1859, %v1868
    %v1872 = vmul.f32 %v1860, %v1868
    %v1873 = vmul.f32 %v1861, %v1868
    %v1874 = vmul.f32 %v1862, %v1868
    %v1875 = vmul.f32 %v1863, %v1868
    %v1876 = vmul.f32 %v1864, %v1868
    %v1877 = vlaneseq
    %v1878 = vshrl.u32 %v1877, 7
    %v1879 = vsub.s32 4, %v1878
    %v1880 = vrot.slane %v1190, %v1879
    %v1881 = vadd.f32 %v1869, %v1880
    %v1882 = vadd.f32 %v1870, %v1880
    %v1883 = vadd.f32 %v1871, %v1880
    %v1884 = vadd.f32 %v1872, %v1880
    %v1885 = vadd.f32 %v1873, %v1880
    %v1886 = vadd.f32 %v1874, %v1880
    %v1887 = vadd.f32 %v1875, %v1880
    %v1888 = vadd.f32 %v1876, %v1880
    %v1889 = vld [vmem:[#allocation4] sm:$0xf]
    %v1892 = vunpack.c.l.s4 1966171168
    %v1893 = vunpack.c.0.s8 %v1892
    %v1894 = vlaneseq
    %v1895 = vshrl.u32 %v1894, 7
    %v1896 = vsub.s32 %v1893, %v1895
    %v1897 = vrot.slane %v1889, %v1896
    %v1898 = vcombine.high %v1897, %v1897
    %v1900 = vunpack.c.l.s4 1966171168
    %v1901 = vunpack.c.0.s8 %v1900
    %v1902 = vlaneseq
    %v1903 = vshrl.u32 %v1902, 7
    %v1904 = vsub.s32 %v1901, %v1903
    %v1905 = vrot.slane %v1897, %v1904
    %v1907 = vunpack.c.l.s4 1966171168
    %v1908 = vunpack.c.0.s8 %v1907
    %v1909 = vlaneseq
    %v1910 = vshrl.u32 %v1909, 7
    %v1911 = vsub.s32 %v1908, %v1910
    %v1912 = vrot.slane %v1898, %v1911
    %v1913 = vcombine.high %v1905, %v1905
    %v1914 = vcombine.high %v1912, %v1912
    %v1915 = vlaneseq
    %v1916 = vshrl.u32 %v1915, 7
    %v1917 = vsub.s32 0, %v1916
    %v1918 = vrot.slane %v1905, %v1917
    %v1919 = vlaneseq
    %v1920 = vshrl.u32 %v1919, 7
    %v1921 = vsub.s32 0, %v1920
    %v1922 = vrot.slane %v1912, %v1921
    %v1923 = vlaneseq
    %v1924 = vshrl.u32 %v1923, 7
    %v1925 = vsub.s32 0, %v1924
    %v1926 = vrot.slane %v1913, %v1925
    %v1927 = vlaneseq
    %v1928 = vshrl.u32 %v1927, 7
    %v1929 = vsub.s32 0, %v1928
    %v1930 = vrot.slane %v1914, %v1929
    %v1935 = vmul.f32 %v1881, %v1918
    %v1936 = vmul.f32 %v1882, %v1918
    %v1937 = vmul.f32 %v1883, %v1922
    %v1938 = vmul.f32 %v1884, %v1922
    %v1939 = vmul.f32 %v1885, %v1926
    %v1940 = vmul.f32 %v1886, %v1926
    %v1941 = vmul.f32 %v1887, %v1930
    %v1942 = vmul.f32 %v1888, %v1930
    %v1951 = vrot.slane %v1936, 7
    %v1952 = vsel %vm1398, %v1951, %v1935
    %v1953 = vrot.slane %v1938, 7
    %v1954 = vsel %vm1398, %v1953, %v1937
    %v1955 = vrot.slane %v1940, 7
    %v1956 = vsel %vm1398, %v1955, %v1939
    %v1957 = vrot.slane %v1942, 7
    %v1958 = vsel %vm1398, %v1957, %v1941
    %v1963 = vsel %vm1748, %v1952, 0.0
    %1964 = vadd.xlane.f32.xlu0 %v1963
    %v1965 = vpop.xlane.xlu0 %1964
    %v1966 = vsel %vm1748, %v1954, 0.0
    %1967 = vadd.xlane.f32.xlu0 %v1966
    %v1968 = vpop.xlane.xlu0 %1967
    %v1969 = vsel %vm1748, %v1956, 0.0
    %1970 = vadd.xlane.f32.xlu0 %v1969
    %v1971 = vpop.xlane.xlu0 %1970
    %v1972 = vsel %vm1748, %v1958, 0.0
    %1973 = vadd.xlane.f32.xlu0 %v1972
    %v1974 = vpop.xlane.xlu0 %1973
    %v1979 = vlaneseq
    %v1980 = vshrl.u32 %v1979, 7
    %v1981 = vsub.s32 %v1365, %v1980
    %v1982 = vrot.slane %v1965, %v1981
    %v1983 = vlaneseq
    %v1984 = vshrl.u32 %v1983, 7
    %v1985 = vsub.s32 %v1365, %v1984
    %v1986 = vrot.slane %v1968, %v1985
    %v1987 = vlaneseq
    %v1988 = vshrl.u32 %v1987, 7
    %v1989 = vsub.s32 %v1365, %v1988
    %v1990 = vrot.slane %v1971, %v1989
    %v1991 = vlaneseq
    %v1992 = vshrl.u32 %v1991, 7
    %v1993 = vsub.s32 %v1365, %v1992
    %v1994 = vrot.slane %v1974, %v1993
    %v1995 = vsel %vm1398, %v1986, %v1982
    %vm1996 = vcmask 1042434
    %v1997 = vsel %vm1996, %v1990, %v1995
    %vm1998 = vcmask 1043459
    %v1999 = vsel %vm1998, %v1994, %v1997
    %vm2001 = vcmask 11264
    %2002 = vst.msk [vmem:[%s6] sm:$0xf] %vm2001, %v1999
    // Predicated region
    $region34: #{tpu_custom_call.1} parent=1 // pred_check
      _
    $region35: #{tpu_custom_call.1} parent=1 // pred_check_branch
      %2004 = sbr.rel (0) target = $region37
    $region36: #{tpu_custom_call.1} parent=1 // pred_region
      _
    $region37: #{tpu_custom_call.1} parent=1 // pred_fallthru
      _
    // Predicated region
    $region38: #{tpu_custom_call.1} parent=1 // pred_check
      _
    $region39: #{tpu_custom_call.1} parent=1 // pred_check_branch
      %2006 = sbr.rel (0) target = $region41
    $region40: #{tpu_custom_call.1} parent=1 // pred_region
      _
    $region41: #{tpu_custom_call.1} parent=1 // pred_fallthru
      _
    %2007 = vsyncpa [#allocation3], 1
    %2008 = vsyncpa [#allocation5], 1

</llo_original>
